<compile_context>
chip_gen: v7x
topology: tpu7x:2x2x1
jax: 0.10.0
libtpu: 0.0.40
codegen_flags: <defaults>
</compile_context>

<pallas_src>
import jax
import jax.numpy as jnp
from jax.experimental import pallas as pl
from jax.experimental.pallas import tpu as pltpu

EPS = 1e-5

# Tap enumeration order (ky-major, then kx) — must match both the weight-matrix
# column order and the mask-row order.
_TAPS = tuple((dy, dx) for dy in (-1, 0, 1) for dx in (-1, 0, 1))

_VMEM_LIMIT = 48 * 1024 * 1024  # <= v7x physical VMEM, leaves headroom


def _make_conv3x3(C, H, W):
    """Returns conv3x3(act_f32, w_ref, m_ref) -> (C, HW) f32.

    act: (C, HW) f32 per-image activation (channel-major, lane-dense).
    w_ref: (C, 9C) bf16 im2col weight matrix, column order (ky, kx, ci).
    m_ref: (9, HW) f32 validity masks (row 4 = center = unused).
    """
    HW = H * W

    def conv3x3(act, w_ref, m_ref):
        taps = []
        for k, (dy, dx) in enumerate(_TAPS):
            s = dy * W + dx
            if s == 0:
                taps.append(act)                       # center tap, always valid
            else:
                # roll left by s: tap[p] = act[p + s]; wrapped positions are
                # exactly the ones the mask zeroes.
                t = pltpu.roll(act, shift=(-s) % HW, axis=1)
                taps.append(jnp.where(m_ref[k:k + 1, :] != 0.0, t, 0.0))
        # Single im2col contraction: bf16 operands, f32 accumulation on the MXU.
        patches = jnp.concatenate(taps, axis=0).astype(jnp.bfloat16)   # (9C, HW)
        return jax.lax.dot_general(
            w_ref[...], patches, (((1,), (0,)), ((), ())),
            preferred_element_type=jnp.float32)

    return conv3x3


def _make_conv_stats_kernel(C, H, W):
    """Pass 1: conv1 per image + per-image BN1 partial sums."""
    conv3x3 = _make_conv3x3(C, H, W)

    def kernel(x_ref, w_ref, m_ref, y_ref, st_ref):
        y = conv3x3(x_ref[...], w_ref, m_ref)          # (C, HW) f32
        y_ref[...] = y
        s1 = jnp.sum(y, axis=1, keepdims=True)
        s2 = jnp.sum(y * y, axis=1, keepdims=True)
        st_ref[...] = jnp.concatenate([s1, s2], axis=1)   # (C, 2)

    return kernel


def _make_bn_relu_conv_stats_kernel(C, H, W):
    """Pass 2: bn1 (folded scale/bias) -> relu -> conv2 + BN2 partial sums."""
    conv3x3 = _make_conv3x3(C, H, W)

    def kernel(y1_ref, sc_ref, bi_ref, w_ref, m_ref, y2_ref, st_ref):
        a = jnp.maximum(y1_ref[...] * sc_ref[...] + bi_ref[...], 0.0)
        y = conv3x3(a, w_ref, m_ref)
        y2_ref[...] = y
        s1 = jnp.sum(y, axis=1, keepdims=True)
        s2 = jnp.sum(y * y, axis=1, keepdims=True)
        st_ref[...] = jnp.concatenate([s1, s2], axis=1)

    return kernel


def _bn_add_relu_kernel(y2_ref, x_ref, sc_ref, bi_ref, o_ref):
    """Pass 3: bn2 (folded) + residual (re-read from HBM) + relu."""
    o_ref[...] = jnp.maximum(
        y2_ref[...] * sc_ref[...] + bi_ref[...] + x_ref[...], 0.0)


def _tap_masks(H, W):
    """(9, H*W) f32 validity masks for the 3x3 'same' conv taps (row 4 = ones)."""
    HW = H * W
    pos = jnp.arange(HW, dtype=jnp.int32)
    h = pos // W
    w = pos % W
    rows = []
    for dy, dx in _TAPS:
        valid = ((h + dy >= 0) & (h + dy < H) & (w + dx >= 0) & (w + dx < W))
        rows.append(valid)
    return jnp.stack(rows, axis=0).astype(jnp.float32)


def _affine_from_stats(stats, gamma, beta, count):
    """Fold training-mode BN (biased var, eps=1e-5) into scale/bias, f32.

    stats: (N, C, 2) per-image [sum, sum_sq].  Note: var = E[x^2] - mean^2 in
    f32 (adequate here; a Welford/two-pass form is safer for extreme means).
    """
    s = jnp.sum(stats.astype(jnp.float32), axis=0)       # (C, 2)
    mean = s[:, 0:1] / count
    var = s[:, 1:2] / count - mean * mean
    scale = gamma.reshape(-1, 1).astype(jnp.float32) * jax.lax.rsqrt(var + EPS)
    bias = beta.reshape(-1, 1).astype(jnp.float32) - mean * scale
    return scale, bias


def basic_block_forward(x_nchw, params):
    """x_nchw: (N, C, H, W) float32.  Returns (N, C, H, W) float32."""
    N, C, H, W = x_nchw.shape
    HW = H * W

    # Pure reshape (H, W are adjacent minor dims) — no transpose, no relayout.
    x_flat = x_nchw.reshape(N, C, HW).astype(jnp.float32)

    # torch conv weight (Cout, Cin, 3, 3) -> im2col matrix (Cout, 9*Cin),
    # column order (ky, kx, ci); bf16 operands for the MXU.
    wm1 = jnp.transpose(params["conv1_w"], (0, 2, 3, 1)).reshape(C, 9 * C)
    wm2 = jnp.transpose(params["conv2_w"], (0, 2, 3, 1)).reshape(C, 9 * C)
    wm1 = wm1.astype(jnp.bfloat16)
    wm2 = wm2.astype(jnp.bfloat16)
    masks = _tap_masks(H, W)                              # (9, HW) f32

    act_spec = pl.BlockSpec((None, C, HW), lambda n: (n, 0, 0))   # per-image tile
    w_spec = pl.BlockSpec((C, 9 * C), lambda n: (0, 0))           # resident
    m_spec = pl.BlockSpec((9, HW), lambda n: (0, 0))              # resident
    vec_spec = pl.BlockSpec((C, 1), lambda n: (0, 0))             # resident
    st_spec = pl.BlockSpec((None, C, 2), lambda n: (n, 0, 0))
    cparams = pltpu.CompilerParams(
        dimension_semantics=("parallel",),
        vmem_limit_bytes=_VMEM_LIMIT)

    # ---- pass 1: conv1 + bn1 partial stats ----
    y1, st1 = pl.pallas_call(
        _make_conv_stats_kernel(C, H, W),
        grid=(N,),
        in_specs=[act_spec, w_spec, m_spec],
        out_specs=(act_spec, st_spec),
        out_shape=(jax.ShapeDtypeStruct((N, C, HW), jnp.float32),
                   jax.ShapeDtypeStruct((N, C, 2), jnp.float32)),
        compiler_params=cparams,
    )(x_flat, wm1, masks)

    count = float(N * HW)
    scale1, bias1 = _affine_from_stats(
        st1, params["bn1_gamma"], params["bn1_beta"], count)

    # ---- pass 2: bn1 -> relu -> conv2 + bn2 partial stats ----
    y2, st2 = pl.pallas_call(
        _make_bn_relu_conv_stats_kernel(C, H, W),
        grid=(N,),
        in_specs=[act_spec, vec_spec, vec_spec, w_spec, m_spec],
        out_specs=(act_spec, st_spec),
        out_shape=(jax.ShapeDtypeStruct((N, C, HW), jnp.float32),
                   jax.ShapeDtypeStruct((N, C, 2), jnp.float32)),
        compiler_params=cparams,
    )(y1, scale1, bias1, wm2, masks)

    scale2, bias2 = _affine_from_stats(
        st2, params["bn2_gamma"], params["bn2_beta"], count)

    # ---- pass 3: bn2 + residual + relu ----
    out_flat = pl.pallas_call(
        _bn_add_relu_kernel,
        grid=(N,),
        in_specs=[act_spec, act_spec, vec_spec, vec_spec],
        out_specs=act_spec,
        out_shape=jax.ShapeDtypeStruct((N, C, HW), jnp.float32),
        compiler_params=cparams,
    )(y2, x_flat, scale2, bias2)

    return out_flat.reshape(N, C, H, W)


# ----------------------- pure-JAX reference for checking -----------------------
# The reference mirrors the kernel's numeric policy (bf16 conv operands with
# f32 accumulation, f32 BatchNorm) so the check isolates implementation
# correctness; the math graph is the PyTorch BasicBlock forward.
def _ref_conv3x3(x_nchw, w):
    return jax.lax.conv_general_dilated(
        x_nchw.astype(jnp.bfloat16), w.astype(jnp.bfloat16),
        window_strides=(1, 1), padding=((1, 1), (1, 1)),
        dimension_numbers=("NCHW", "OIHW", "NCHW"),
        preferred_element_type=jnp.float32)


def _ref_bn_train(x, gamma, beta):
    mean = jnp.mean(x, axis=(0, 2, 3), keepdims=True)
    var = jnp.mean((x - mean) ** 2, axis=(0, 2, 3), keepdims=True)
    return ((x - mean) * jax.lax.rsqrt(var + EPS)
            * gamma.reshape(1, -1, 1, 1) + beta.reshape(1, -1, 1, 1))


def basic_block_reference(x, p):
    out = _ref_conv3x3(x, p["conv1_w"])
    out = jnp.maximum(_ref_bn_train(out, p["bn1_gamma"], p["bn1_beta"]), 0.0)
    out = _ref_conv3x3(out, p["conv2_w"])
    out = _ref_bn_train(out, p["bn2_gamma"], p["bn2_beta"])
    return jnp.maximum(out + x, 0.0)


if __name__ == "__main__":
    N, C, H, W = 2, 4, 16, 16   # inplanes == planes == 4, stride=1, downsample=None
    key = jax.random.PRNGKey(0)
    kx, k1, k2 = jax.random.split(key, 3)

    x = jax.random.normal(kx, (N, C, H, W), jnp.float32)
    params = {
        # deterministic synthetic init (PyTorch shapes: (Cout, Cin, 3, 3))
        "conv1_w": 0.1 * jax.random.normal(k1, (C, C, 3, 3), jnp.float32),
        "conv2_w": 0.1 * jax.random.normal(k2, (C, C, 3, 3), jnp.float32),
        # BatchNorm affine params at PyTorch defaults
        "bn1_gamma": jnp.ones((C,), jnp.float32),
        "bn1_beta": jnp.zeros((C,), jnp.float32),
        "bn2_gamma": jnp.ones((C,), jnp.float32),
        "bn2_beta": jnp.zeros((C,), jnp.float32),
    }

    out = jax.block_until_ready(jax.jit(basic_block_forward)(x, params))
    ref = jax.block_until_ready(basic_block_reference(x, params))
    assert out.shape == (N, C, H, W)
    max_err = float(jnp.max(jnp.abs(out - ref)))
    assert jnp.allclose(out, ref, rtol=1e-2, atol=1e-2), max_err
    print("KERNEL_OK")
</pallas_src>

<mosaic_0001>
module attributes {stable_mosaic.version = 11 : i64} {
  func.func @kernel(%arg0: i32, %arg1: memref<1x4x256xf32, #tpu.memory_space<vmem>>, %arg2: memref<4x1xf32, #tpu.memory_space<vmem>>, %arg3: memref<4x1xf32, #tpu.memory_space<vmem>>, %arg4: memref<4x36xbf16, #tpu.memory_space<vmem>>, %arg5: memref<9x256xf32, #tpu.memory_space<vmem>>, %arg6: memref<1x4x256xf32, #tpu.memory_space<vmem>>, %arg7: memref<1x4x2xf32, #tpu.memory_space<vmem>>) attributes {dimension_semantics = [#tpu.dimension_semantics<parallel>], iteration_bounds = array<i64: 2>, scalar_prefetch = 0 : i64, scratch_operands = 0 : i64, tpu.core_type = #tpu.core_type<tc>, window_params = [{transform_indices = @transform_0, window_bounds = array<i64: 1, 4, 256>}, {pipeline_mode = #tpu.pipeline_mode<synchronous>, transform_indices = @transform_1, window_bounds = array<i64: 4, 1>}, {pipeline_mode = #tpu.pipeline_mode<synchronous>, transform_indices = @transform_2, window_bounds = array<i64: 4, 1>}, {pipeline_mode = #tpu.pipeline_mode<synchronous>, transform_indices = @transform_3, window_bounds = array<i64: 4, 36>}, {pipeline_mode = #tpu.pipeline_mode<synchronous>, transform_indices = @transform_4, window_bounds = array<i64: 9, 256>}, {transform_indices = @transform_5, window_bounds = array<i64: 1, 4, 256>}, {transform_indices = @transform_6, window_bounds = array<i64: 1, 4, 2>}]} {
    %c0 = arith.constant 0 : index
    %c0_0 = arith.constant 0 : index
    %c0_1 = arith.constant 0 : index
    %0 = vector.load %arg1[%c0, %c0_0, %c0_1] : memref<1x4x256xf32, #tpu.memory_space<vmem>>, vector<1x4x256xf32>
    %1 = vector.shape_cast %0 : vector<1x4x256xf32> to vector<4x256xf32>
    %c0_2 = arith.constant 0 : index
    %c0_3 = arith.constant 0 : index
    %2 = vector.load %arg2[%c0_2, %c0_3] : memref<4x1xf32, #tpu.memory_space<vmem>>, vector<4x1xf32>
    %3 = vector.broadcast %2 : vector<4x1xf32> to vector<4x256xf32>
    %4 = arith.mulf %1, %3 : vector<4x256xf32>
    %c0_4 = arith.constant 0 : index
    %c0_5 = arith.constant 0 : index
    %5 = vector.load %arg3[%c0_4, %c0_5] : memref<4x1xf32, #tpu.memory_space<vmem>>, vector<4x1xf32>
    %6 = vector.broadcast %5 : vector<4x1xf32> to vector<4x256xf32>
    %7 = arith.addf %4, %6 : vector<4x256xf32>
    %cst = arith.constant 0.000000e+00 : f32
    %8 = vector.broadcast %cst : f32 to vector<4x256xf32>
    %9 = arith.maximumf %7, %8 : vector<4x256xf32>
    %c17_i32 = arith.constant 17 : i32
    %10 = tpu.dynamic_rotate %9 by %c17_i32 dim 1 : vector<4x256xf32>, i32 -> vector<4x256xf32>
    %c0_6 = arith.constant 0 : index
    %c0_7 = arith.constant 0 : index
    %11 = vector.load %arg5[%c0_6, %c0_7] : memref<9x256xf32, #tpu.memory_space<vmem>>, vector<1x256xf32>
    %cst_8 = arith.constant 0.000000e+00 : f32
    %12 = vector.broadcast %cst_8 : f32 to vector<1x256xf32>
    %13 = arith.cmpf one, %11, %12 : vector<1x256xf32>
    %cst_9 = arith.constant 0.000000e+00 : f32
    %14 = vector.shape_cast %13 : vector<1x256xi1> to vector<1x256xi1>
    %15 = vector.broadcast %14 : vector<1x256xi1> to vector<4x256xi1>
    %16 = vector.broadcast %cst_9 : f32 to vector<4x256xf32>
    %17 = arith.select %15, %10, %16 : vector<4x256xi1>, vector<4x256xf32>
    %c16_i32 = arith.constant 16 : i32
    %18 = tpu.dynamic_rotate %9 by %c16_i32 dim 1 : vector<4x256xf32>, i32 -> vector<4x256xf32>
    %c1 = arith.constant 1 : index
    %c0_10 = arith.constant 0 : index
    %19 = vector.load %arg5[%c1, %c0_10] : memref<9x256xf32, #tpu.memory_space<vmem>>, vector<1x256xf32>
    %cst_11 = arith.constant 0.000000e+00 : f32
    %20 = vector.broadcast %cst_11 : f32 to vector<1x256xf32>
    %21 = arith.cmpf one, %19, %20 : vector<1x256xf32>
    %cst_12 = arith.constant 0.000000e+00 : f32
    %22 = vector.shape_cast %21 : vector<1x256xi1> to vector<1x256xi1>
    %23 = vector.broadcast %22 : vector<1x256xi1> to vector<4x256xi1>
    %24 = vector.broadcast %cst_12 : f32 to vector<4x256xf32>
    %25 = arith.select %23, %18, %24 : vector<4x256xi1>, vector<4x256xf32>
    %c15_i32 = arith.constant 15 : i32
    %26 = tpu.dynamic_rotate %9 by %c15_i32 dim 1 : vector<4x256xf32>, i32 -> vector<4x256xf32>
    %c2 = arith.constant 2 : index
    %c0_13 = arith.constant 0 : index
    %27 = vector.load %arg5[%c2, %c0_13] : memref<9x256xf32, #tpu.memory_space<vmem>>, vector<1x256xf32>
    %cst_14 = arith.constant 0.000000e+00 : f32
    %28 = vector.broadcast %cst_14 : f32 to vector<1x256xf32>
    %29 = arith.cmpf one, %27, %28 : vector<1x256xf32>
    %cst_15 = arith.constant 0.000000e+00 : f32
    %30 = vector.shape_cast %29 : vector<1x256xi1> to vector<1x256xi1>
    %31 = vector.broadcast %30 : vector<1x256xi1> to vector<4x256xi1>
    %32 = vector.broadcast %cst_15 : f32 to vector<4x256xf32>
    %33 = arith.select %31, %26, %32 : vector<4x256xi1>, vector<4x256xf32>
    %c1_i32 = arith.constant 1 : i32
    %34 = tpu.dynamic_rotate %9 by %c1_i32 dim 1 : vector<4x256xf32>, i32 -> vector<4x256xf32>
    %c3 = arith.constant 3 : index
    %c0_16 = arith.constant 0 : index
    %35 = vector.load %arg5[%c3, %c0_16] : memref<9x256xf32, #tpu.memory_space<vmem>>, vector<1x256xf32>
    %cst_17 = arith.constant 0.000000e+00 : f32
    %36 = vector.broadcast %cst_17 : f32 to vector<1x256xf32>
    %37 = arith.cmpf one, %35, %36 : vector<1x256xf32>
    %cst_18 = arith.constant 0.000000e+00 : f32
    %38 = vector.shape_cast %37 : vector<1x256xi1> to vector<1x256xi1>
    %39 = vector.broadcast %38 : vector<1x256xi1> to vector<4x256xi1>
    %40 = vector.broadcast %cst_18 : f32 to vector<4x256xf32>
    %41 = arith.select %39, %34, %40 : vector<4x256xi1>, vector<4x256xf32>
    %c255_i32 = arith.constant 255 : i32
    %42 = tpu.dynamic_rotate %9 by %c255_i32 dim 1 : vector<4x256xf32>, i32 -> vector<4x256xf32>
    %c5 = arith.constant 5 : index
    %c0_19 = arith.constant 0 : index
    %43 = vector.load %arg5[%c5, %c0_19] : memref<9x256xf32, #tpu.memory_space<vmem>>, vector<1x256xf32>
    %cst_20 = arith.constant 0.000000e+00 : f32
    %44 = vector.broadcast %cst_20 : f32 to vector<1x256xf32>
    %45 = arith.cmpf one, %43, %44 : vector<1x256xf32>
    %cst_21 = arith.constant 0.000000e+00 : f32
    %46 = vector.shape_cast %45 : vector<1x256xi1> to vector<1x256xi1>
    %47 = vector.broadcast %46 : vector<1x256xi1> to vector<4x256xi1>
    %48 = vector.broadcast %cst_21 : f32 to vector<4x256xf32>
    %49 = arith.select %47, %42, %48 : vector<4x256xi1>, vector<4x256xf32>
    %c241_i32 = arith.constant 241 : i32
    %50 = tpu.dynamic_rotate %9 by %c241_i32 dim 1 : vector<4x256xf32>, i32 -> vector<4x256xf32>
    %c6 = arith.constant 6 : index
    %c0_22 = arith.constant 0 : index
    %51 = vector.load %arg5[%c6, %c0_22] : memref<9x256xf32, #tpu.memory_space<vmem>>, vector<1x256xf32>
    %cst_23 = arith.constant 0.000000e+00 : f32
    %52 = vector.broadcast %cst_23 : f32 to vector<1x256xf32>
    %53 = arith.cmpf one, %51, %52 : vector<1x256xf32>
    %cst_24 = arith.constant 0.000000e+00 : f32
    %54 = vector.shape_cast %53 : vector<1x256xi1> to vector<1x256xi1>
    %55 = vector.broadcast %54 : vector<1x256xi1> to vector<4x256xi1>
    %56 = vector.broadcast %cst_24 : f32 to vector<4x256xf32>
    %57 = arith.select %55, %50, %56 : vector<4x256xi1>, vector<4x256xf32>
    %c240_i32 = arith.constant 240 : i32
    %58 = tpu.dynamic_rotate %9 by %c240_i32 dim 1 : vector<4x256xf32>, i32 -> vector<4x256xf32>
    %c7 = arith.constant 7 : index
    %c0_25 = arith.constant 0 : index
    %59 = vector.load %arg5[%c7, %c0_25] : memref<9x256xf32, #tpu.memory_space<vmem>>, vector<1x256xf32>
    %cst_26 = arith.constant 0.000000e+00 : f32
    %60 = vector.broadcast %cst_26 : f32 to vector<1x256xf32>
    %61 = arith.cmpf one, %59, %60 : vector<1x256xf32>
    %cst_27 = arith.constant 0.000000e+00 : f32
    %62 = vector.shape_cast %61 : vector<1x256xi1> to vector<1x256xi1>
    %63 = vector.broadcast %62 : vector<1x256xi1> to vector<4x256xi1>
    %64 = vector.broadcast %cst_27 : f32 to vector<4x256xf32>
    %65 = arith.select %63, %58, %64 : vector<4x256xi1>, vector<4x256xf32>
    %c239_i32 = arith.constant 239 : i32
    %66 = tpu.dynamic_rotate %9 by %c239_i32 dim 1 : vector<4x256xf32>, i32 -> vector<4x256xf32>
    %c8 = arith.constant 8 : index
    %c0_28 = arith.constant 0 : index
    %67 = vector.load %arg5[%c8, %c0_28] : memref<9x256xf32, #tpu.memory_space<vmem>>, vector<1x256xf32>
    %cst_29 = arith.constant 0.000000e+00 : f32
    %68 = vector.broadcast %cst_29 : f32 to vector<1x256xf32>
    %69 = arith.cmpf one, %67, %68 : vector<1x256xf32>
    %cst_30 = arith.constant 0.000000e+00 : f32
    %70 = vector.shape_cast %69 : vector<1x256xi1> to vector<1x256xi1>
    %71 = vector.broadcast %70 : vector<1x256xi1> to vector<4x256xi1>
    %72 = vector.broadcast %cst_30 : f32 to vector<4x256xf32>
    %73 = arith.select %71, %66, %72 : vector<4x256xi1>, vector<4x256xf32>
    %74 = tpu.concatenate %17, %25, %33, %41, %9, %49, %57, %65, %73 in 0 : vector<4x256xf32>, vector<4x256xf32>, vector<4x256xf32>, vector<4x256xf32>, vector<4x256xf32>, vector<4x256xf32>, vector<4x256xf32>, vector<4x256xf32>, vector<4x256xf32> -> vector<36x256xf32>
    %75 = arith.truncf %74 : vector<36x256xf32> to vector<36x256xbf16>
    %c0_31 = arith.constant 0 : index
    %c0_32 = arith.constant 0 : index
    %76 = vector.load %arg4[%c0_31, %c0_32] : memref<4x36xbf16, #tpu.memory_space<vmem>>, vector<4x36xbf16>
    %cst_33 = arith.constant dense<0.000000e+00> : vector<4x256xf32>
    %77 = tpu.matmul %76, %75, %cst_33 {dimension_numbers = #tpu.dot_dimension_numbers<[1], [0], [0], [1], [0, 0, 1, 1], [], []>} : vector<4x36xbf16>, vector<36x256xbf16>, vector<4x256xf32> -> vector<4x256xf32>
    %c0_34 = arith.constant 0 : index
    %c0_35 = arith.constant 0 : index
    %c0_36 = arith.constant 0 : index
    %78 = vector.load %arg6[%c0_34, %c0_35, %c0_36] : memref<1x4x256xf32, #tpu.memory_space<vmem>>, vector<1x4x256xf32>
    %79 = vector.shape_cast %78 : vector<1x4x256xf32> to vector<4x256xf32>
    %80 = vector.shape_cast %77 : vector<4x256xf32> to vector<1x4x256xf32>
    tpu.vector_store %arg6[%c0_34, %c0_35, %c0_36], %80 {strides = array<i32>} : memref<1x4x256xf32, #tpu.memory_space<vmem>>, vector<1x4x256xf32>,
    %cst_37 = arith.constant dense<0.000000e+00> : vector<4xf32>
    %81 = vector.multi_reduction <add>, %77, %cst_37 [1] : vector<4x256xf32> to vector<4xf32>
    %82 = vector.shape_cast %81 : vector<4xf32> to vector<4x1xf32>
    %83 = arith.mulf %77, %77 : vector<4x256xf32>
    %cst_38 = arith.constant dense<0.000000e+00> : vector<4xf32>
    %84 = vector.multi_reduction <add>, %83, %cst_38 [1] : vector<4x256xf32> to vector<4xf32>
    %85 = vector.shape_cast %84 : vector<4xf32> to vector<4x1xf32>
    %86 = tpu.concatenate %82, %85 in 1 : vector<4x1xf32>, vector<4x1xf32> -> vector<4x2xf32>
    %c0_39 = arith.constant 0 : index
    %c0_40 = arith.constant 0 : index
    %c0_41 = arith.constant 0 : index
    %87 = vector.load %arg7[%c0_39, %c0_40, %c0_41] : memref<1x4x2xf32, #tpu.memory_space<vmem>>, vector<1x4x2xf32>
    %88 = vector.shape_cast %87 : vector<1x4x2xf32> to vector<4x2xf32>
    %89 = vector.shape_cast %86 : vector<4x2xf32> to vector<1x4x2xf32>
    tpu.vector_store %arg7[%c0_39, %c0_40, %c0_41], %89 {strides = array<i32>} : memref<1x4x2xf32, #tpu.memory_space<vmem>>, vector<1x4x2xf32>,
    return
  }
  func.func @transform_0(%arg0: i32) -> (i32, i32, i32) {
    %c0_i32 = arith.constant 0 : i32
    %c0_i32_0 = arith.constant 0 : i32
    %c0_i32_1 = arith.constant 0 : i32
    return %arg0, %c0_i32, %c0_i32_0 : i32, i32, i32
  }
  func.func @transform_1(%arg0: i32) -> (i32, i32) {
    %c0_i32 = arith.constant 0 : i32
    %c0_i32_0 = arith.constant 0 : i32
    %c0_i32_1 = arith.constant 0 : i32
    return %c0_i32, %c0_i32_0 : i32, i32
  }
  func.func @transform_2(%arg0: i32) -> (i32, i32) {
    %c0_i32 = arith.constant 0 : i32
    %c0_i32_0 = arith.constant 0 : i32
    %c0_i32_1 = arith.constant 0 : i32
    return %c0_i32, %c0_i32_0 : i32, i32
  }
  func.func @transform_3(%arg0: i32) -> (i32, i32) {
    %c0_i32 = arith.constant 0 : i32
    %c0_i32_0 = arith.constant 0 : i32
    %c0_i32_1 = arith.constant 0 : i32
    return %c0_i32, %c0_i32_0 : i32, i32
  }
  func.func @transform_4(%arg0: i32) -> (i32, i32) {
    %c0_i32 = arith.constant 0 : i32
    %c0_i32_0 = arith.constant 0 : i32
    %c0_i32_1 = arith.constant 0 : i32
    return %c0_i32, %c0_i32_0 : i32, i32
  }
  func.func @transform_5(%arg0: i32) -> (i32, i32, i32) {
    %c0_i32 = arith.constant 0 : i32
    %c0_i32_0 = arith.constant 0 : i32
    %c0_i32_1 = arith.constant 0 : i32
    return %arg0, %c0_i32, %c0_i32_0 : i32, i32, i32
  }
  func.func @transform_6(%arg0: i32) -> (i32, i32, i32) {
    %c0_i32 = arith.constant 0 : i32
    %c0_i32_0 = arith.constant 0 : i32
    %c0_i32_1 = arith.constant 0 : i32
    return %arg0, %c0_i32, %c0_i32_0 : i32, i32, i32
  }
}

module attributes {stable_mosaic.version = 11 : i64} {
  func.func @_bn_add_relu_kernel(%arg0: i32, %arg1: memref<1x4x256xf32, #tpu.memory_space<vmem>>, %arg2: memref<1x4x256xf32, #tpu.memory_space<vmem>>, %arg3: memref<4x1xf32, #tpu.memory_space<vmem>>, %arg4: memref<4x1xf32, #tpu.memory_space<vmem>>, %arg5: memref<1x4x256xf32, #tpu.memory_space<vmem>>) attributes {dimension_semantics = [#tpu.dimension_semantics<parallel>], iteration_bounds = array<i64: 2>, scalar_prefetch = 0 : i64, scratch_operands = 0 : i64, tpu.core_type = #tpu.core_type<tc>, window_params = [{transform_indices = @transform_0, window_bounds = array<i64: 1, 4, 256>}, {transform_indices = @transform_1, window_bounds = array<i64: 1, 4, 256>}, {pipeline_mode = #tpu.pipeline_mode<synchronous>, transform_indices = @transform_2, window_bounds = array<i64: 4, 1>}, {pipeline_mode = #tpu.pipeline_mode<synchronous>, transform_indices = @transform_3, window_bounds = array<i64: 4, 1>}, {transform_indices = @transform_4, window_bounds = array<i64: 1, 4, 256>}]} {
    %c0 = arith.constant 0 : index
    %c0_0 = arith.constant 0 : index
    %c0_1 = arith.constant 0 : index
    %0 = vector.load %arg1[%c0, %c0_0, %c0_1] : memref<1x4x256xf32, #tpu.memory_space<vmem>>, vector<1x4x256xf32>
    %1 = vector.shape_cast %0 : vector<1x4x256xf32> to vector<4x256xf32>
    %c0_2 = arith.constant 0 : index
    %c0_3 = arith.constant 0 : index
    %2 = vector.load %arg3[%c0_2, %c0_3] : memref<4x1xf32, #tpu.memory_space<vmem>>, vector<4x1xf32>
    %3 = vector.broadcast %2 : vector<4x1xf32> to vector<4x256xf32>
    %4 = arith.mulf %1, %3 : vector<4x256xf32>
    %c0_4 = arith.constant 0 : index
    %c0_5 = arith.constant 0 : index
    %5 = vector.load %arg4[%c0_4, %c0_5] : memref<4x1xf32, #tpu.memory_space<vmem>>, vector<4x1xf32>
    %6 = vector.broadcast %5 : vector<4x1xf32> to vector<4x256xf32>
    %7 = arith.addf %4, %6 : vector<4x256xf32>
    %c0_6 = arith.constant 0 : index
    %c0_7 = arith.constant 0 : index
    %c0_8 = arith.constant 0 : index
    %8 = vector.load %arg2[%c0_6, %c0_7, %c0_8] : memref<1x4x256xf32, #tpu.memory_space<vmem>>, vector<1x4x256xf32>
    %9 = vector.shape_cast %8 : vector<1x4x256xf32> to vector<4x256xf32>
    %10 = arith.addf %7, %9 : vector<4x256xf32>
    %cst = arith.constant 0.000000e+00 : f32
    %11 = vector.broadcast %cst : f32 to vector<4x256xf32>
    %12 = arith.maximumf %10, %11 : vector<4x256xf32>
    %c0_9 = arith.constant 0 : index
    %c0_10 = arith.constant 0 : index
    %c0_11 = arith.constant 0 : index
    %13 = vector.load %arg5[%c0_9, %c0_10, %c0_11] : memref<1x4x256xf32, #tpu.memory_space<vmem>>, vector<1x4x256xf32>
    %14 = vector.shape_cast %13 : vector<1x4x256xf32> to vector<4x256xf32>
    %15 = vector.shape_cast %12 : vector<4x256xf32> to vector<1x4x256xf32>
    tpu.vector_store %arg5[%c0_9, %c0_10, %c0_11], %15 {strides = array<i32>} : memref<1x4x256xf32, #tpu.memory_space<vmem>>, vector<1x4x256xf32>,
    return
  }
  func.func @transform_0(%arg0: i32) -> (i32, i32, i32) {
    %c0_i32 = arith.constant 0 : i32
    %c0_i32_0 = arith.constant 0 : i32
    %c0_i32_1 = arith.constant 0 : i32
    return %arg0, %c0_i32, %c0_i32_0 : i32, i32, i32
  }
  func.func @transform_1(%arg0: i32) -> (i32, i32, i32) {
    %c0_i32 = arith.constant 0 : i32
    %c0_i32_0 = arith.constant 0 : i32
    %c0_i32_1 = arith.constant 0 : i32
    return %arg0, %c0_i32, %c0_i32_0 : i32, i32, i32
  }
  func.func @transform_2(%arg0: i32) -> (i32, i32) {
    %c0_i32 = arith.constant 0 : i32
    %c0_i32_0 = arith.constant 0 : i32
    %c0_i32_1 = arith.constant 0 : i32
    return %c0_i32, %c0_i32_0 : i32, i32
  }
  func.func @transform_3(%arg0: i32) -> (i32, i32) {
    %c0_i32 = arith.constant 0 : i32
    %c0_i32_0 = arith.constant 0 : i32
    %c0_i32_1 = arith.constant 0 : i32
    return %c0_i32, %c0_i32_0 : i32, i32
  }
  func.func @transform_4(%arg0: i32) -> (i32, i32, i32) {
    %c0_i32 = arith.constant 0 : i32
    %c0_i32_0 = arith.constant 0 : i32
    %c0_i32_1 = arith.constant 0 : i32
    return %arg0, %c0_i32, %c0_i32_0 : i32, i32, i32
  }
}

module attributes {stable_mosaic.version = 11 : i64} {
  func.func @kernel(%arg0: i32, %arg1: memref<1x4x256xf32, #tpu.memory_space<vmem>>, %arg2: memref<4x36xbf16, #tpu.memory_space<vmem>>, %arg3: memref<9x256xf32, #tpu.memory_space<vmem>>, %arg4: memref<1x4x256xf32, #tpu.memory_space<vmem>>, %arg5: memref<1x4x2xf32, #tpu.memory_space<vmem>>) attributes {dimension_semantics = [#tpu.dimension_semantics<parallel>], iteration_bounds = array<i64: 2>, scalar_prefetch = 0 : i64, scratch_operands = 0 : i64, tpu.core_type = #tpu.core_type<tc>, window_params = [{transform_indices = @transform_0, window_bounds = array<i64: 1, 4, 256>}, {pipeline_mode = #tpu.pipeline_mode<synchronous>, transform_indices = @transform_1, window_bounds = array<i64: 4, 36>}, {pipeline_mode = #tpu.pipeline_mode<synchronous>, transform_indices = @transform_2, window_bounds = array<i64: 9, 256>}, {transform_indices = @transform_3, window_bounds = array<i64: 1, 4, 256>}, {transform_indices = @transform_4, window_bounds = array<i64: 1, 4, 2>}]} {
    %c0 = arith.constant 0 : index
    %c0_0 = arith.constant 0 : index
    %c0_1 = arith.constant 0 : index
    %0 = vector.load %arg1[%c0, %c0_0, %c0_1] : memref<1x4x256xf32, #tpu.memory_space<vmem>>, vector<1x4x256xf32>
    %1 = vector.shape_cast %0 : vector<1x4x256xf32> to vector<4x256xf32>
    %c17_i32 = arith.constant 17 : i32
    %2 = tpu.dynamic_rotate %1 by %c17_i32 dim 1 : vector<4x256xf32>, i32 -> vector<4x256xf32>
    %c0_2 = arith.constant 0 : index
    %c0_3 = arith.constant 0 : index
    %3 = vector.load %arg3[%c0_2, %c0_3] : memref<9x256xf32, #tpu.memory_space<vmem>>, vector<1x256xf32>
    %cst = arith.constant 0.000000e+00 : f32
    %4 = vector.broadcast %cst : f32 to vector<1x256xf32>
    %5 = arith.cmpf one, %3, %4 : vector<1x256xf32>
    %cst_4 = arith.constant 0.000000e+00 : f32
    %6 = vector.shape_cast %5 : vector<1x256xi1> to vector<1x256xi1>
    %7 = vector.broadcast %6 : vector<1x256xi1> to vector<4x256xi1>
    %8 = vector.broadcast %cst_4 : f32 to vector<4x256xf32>
    %9 = arith.select %7, %2, %8 : vector<4x256xi1>, vector<4x256xf32>
    %c16_i32 = arith.constant 16 : i32
    %10 = tpu.dynamic_rotate %1 by %c16_i32 dim 1 : vector<4x256xf32>, i32 -> vector<4x256xf32>
    %c1 = arith.constant 1 : index
    %c0_5 = arith.constant 0 : index
    %11 = vector.load %arg3[%c1, %c0_5] : memref<9x256xf32, #tpu.memory_space<vmem>>, vector<1x256xf32>
    %cst_6 = arith.constant 0.000000e+00 : f32
    %12 = vector.broadcast %cst_6 : f32 to vector<1x256xf32>
    %13 = arith.cmpf one, %11, %12 : vector<1x256xf32>
    %cst_7 = arith.constant 0.000000e+00 : f32
    %14 = vector.shape_cast %13 : vector<1x256xi1> to vector<1x256xi1>
    %15 = vector.broadcast %14 : vector<1x256xi1> to vector<4x256xi1>
    %16 = vector.broadcast %cst_7 : f32 to vector<4x256xf32>
    %17 = arith.select %15, %10, %16 : vector<4x256xi1>, vector<4x256xf32>
    %c15_i32 = arith.constant 15 : i32
    %18 = tpu.dynamic_rotate %1 by %c15_i32 dim 1 : vector<4x256xf32>, i32 -> vector<4x256xf32>
    %c2 = arith.constant 2 : index
    %c0_8 = arith.constant 0 : index
    %19 = vector.load %arg3[%c2, %c0_8] : memref<9x256xf32, #tpu.memory_space<vmem>>, vector<1x256xf32>
    %cst_9 = arith.constant 0.000000e+00 : f32
    %20 = vector.broadcast %cst_9 : f32 to vector<1x256xf32>
    %21 = arith.cmpf one, %19, %20 : vector<1x256xf32>
    %cst_10 = arith.constant 0.000000e+00 : f32
    %22 = vector.shape_cast %21 : vector<1x256xi1> to vector<1x256xi1>
    %23 = vector.broadcast %22 : vector<1x256xi1> to vector<4x256xi1>
    %24 = vector.broadcast %cst_10 : f32 to vector<4x256xf32>
    %25 = arith.select %23, %18, %24 : vector<4x256xi1>, vector<4x256xf32>
    %c1_i32 = arith.constant 1 : i32
    %26 = tpu.dynamic_rotate %1 by %c1_i32 dim 1 : vector<4x256xf32>, i32 -> vector<4x256xf32>
    %c3 = arith.constant 3 : index
    %c0_11 = arith.constant 0 : index
    %27 = vector.load %arg3[%c3, %c0_11] : memref<9x256xf32, #tpu.memory_space<vmem>>, vector<1x256xf32>
    %cst_12 = arith.constant 0.000000e+00 : f32
    %28 = vector.broadcast %cst_12 : f32 to vector<1x256xf32>
    %29 = arith.cmpf one, %27, %28 : vector<1x256xf32>
    %cst_13 = arith.constant 0.000000e+00 : f32
    %30 = vector.shape_cast %29 : vector<1x256xi1> to vector<1x256xi1>
    %31 = vector.broadcast %30 : vector<1x256xi1> to vector<4x256xi1>
    %32 = vector.broadcast %cst_13 : f32 to vector<4x256xf32>
    %33 = arith.select %31, %26, %32 : vector<4x256xi1>, vector<4x256xf32>
    %c255_i32 = arith.constant 255 : i32
    %34 = tpu.dynamic_rotate %1 by %c255_i32 dim 1 : vector<4x256xf32>, i32 -> vector<4x256xf32>
    %c5 = arith.constant 5 : index
    %c0_14 = arith.constant 0 : index
    %35 = vector.load %arg3[%c5, %c0_14] : memref<9x256xf32, #tpu.memory_space<vmem>>, vector<1x256xf32>
    %cst_15 = arith.constant 0.000000e+00 : f32
    %36 = vector.broadcast %cst_15 : f32 to vector<1x256xf32>
    %37 = arith.cmpf one, %35, %36 : vector<1x256xf32>
    %cst_16 = arith.constant 0.000000e+00 : f32
    %38 = vector.shape_cast %37 : vector<1x256xi1> to vector<1x256xi1>
    %39 = vector.broadcast %38 : vector<1x256xi1> to vector<4x256xi1>
    %40 = vector.broadcast %cst_16 : f32 to vector<4x256xf32>
    %41 = arith.select %39, %34, %40 : vector<4x256xi1>, vector<4x256xf32>
    %c241_i32 = arith.constant 241 : i32
    %42 = tpu.dynamic_rotate %1 by %c241_i32 dim 1 : vector<4x256xf32>, i32 -> vector<4x256xf32>
    %c6 = arith.constant 6 : index
    %c0_17 = arith.constant 0 : index
    %43 = vector.load %arg3[%c6, %c0_17] : memref<9x256xf32, #tpu.memory_space<vmem>>, vector<1x256xf32>
    %cst_18 = arith.constant 0.000000e+00 : f32
    %44 = vector.broadcast %cst_18 : f32 to vector<1x256xf32>
    %45 = arith.cmpf one, %43, %44 : vector<1x256xf32>
    %cst_19 = arith.constant 0.000000e+00 : f32
    %46 = vector.shape_cast %45 : vector<1x256xi1> to vector<1x256xi1>
    %47 = vector.broadcast %46 : vector<1x256xi1> to vector<4x256xi1>
    %48 = vector.broadcast %cst_19 : f32 to vector<4x256xf32>
    %49 = arith.select %47, %42, %48 : vector<4x256xi1>, vector<4x256xf32>
    %c240_i32 = arith.constant 240 : i32
    %50 = tpu.dynamic_rotate %1 by %c240_i32 dim 1 : vector<4x256xf32>, i32 -> vector<4x256xf32>
    %c7 = arith.constant 7 : index
    %c0_20 = arith.constant 0 : index
    %51 = vector.load %arg3[%c7, %c0_20] : memref<9x256xf32, #tpu.memory_space<vmem>>, vector<1x256xf32>
    %cst_21 = arith.constant 0.000000e+00 : f32
    %52 = vector.broadcast %cst_21 : f32 to vector<1x256xf32>
    %53 = arith.cmpf one, %51, %52 : vector<1x256xf32>
    %cst_22 = arith.constant 0.000000e+00 : f32
    %54 = vector.shape_cast %53 : vector<1x256xi1> to vector<1x256xi1>
    %55 = vector.broadcast %54 : vector<1x256xi1> to vector<4x256xi1>
    %56 = vector.broadcast %cst_22 : f32 to vector<4x256xf32>
    %57 = arith.select %55, %50, %56 : vector<4x256xi1>, vector<4x256xf32>
    %c239_i32 = arith.constant 239 : i32
    %58 = tpu.dynamic_rotate %1 by %c239_i32 dim 1 : vector<4x256xf32>, i32 -> vector<4x256xf32>
    %c8 = arith.constant 8 : index
    %c0_23 = arith.constant 0 : index
    %59 = vector.load %arg3[%c8, %c0_23] : memref<9x256xf32, #tpu.memory_space<vmem>>, vector<1x256xf32>
    %cst_24 = arith.constant 0.000000e+00 : f32
    %60 = vector.broadcast %cst_24 : f32 to vector<1x256xf32>
    %61 = arith.cmpf one, %59, %60 : vector<1x256xf32>
    %cst_25 = arith.constant 0.000000e+00 : f32
    %62 = vector.shape_cast %61 : vector<1x256xi1> to vector<1x256xi1>
    %63 = vector.broadcast %62 : vector<1x256xi1> to vector<4x256xi1>
    %64 = vector.broadcast %cst_25 : f32 to vector<4x256xf32>
    %65 = arith.select %63, %58, %64 : vector<4x256xi1>, vector<4x256xf32>
    %66 = tpu.concatenate %9, %17, %25, %33, %1, %41, %49, %57, %65 in 0 : vector<4x256xf32>, vector<4x256xf32>, vector<4x256xf32>, vector<4x256xf32>, vector<4x256xf32>, vector<4x256xf32>, vector<4x256xf32>, vector<4x256xf32>, vector<4x256xf32> -> vector<36x256xf32>
    %67 = arith.truncf %66 : vector<36x256xf32> to vector<36x256xbf16>
    %c0_26 = arith.constant 0 : index
    %c0_27 = arith.constant 0 : index
    %68 = vector.load %arg2[%c0_26, %c0_27] : memref<4x36xbf16, #tpu.memory_space<vmem>>, vector<4x36xbf16>
    %cst_28 = arith.constant dense<0.000000e+00> : vector<4x256xf32>
    %69 = tpu.matmul %68, %67, %cst_28 {dimension_numbers = #tpu.dot_dimension_numbers<[1], [0], [0], [1], [0, 0, 1, 1], [], []>} : vector<4x36xbf16>, vector<36x256xbf16>, vector<4x256xf32> -> vector<4x256xf32>
    %c0_29 = arith.constant 0 : index
    %c0_30 = arith.constant 0 : index
    %c0_31 = arith.constant 0 : index
    %70 = vector.load %arg4[%c0_29, %c0_30, %c0_31] : memref<1x4x256xf32, #tpu.memory_space<vmem>>, vector<1x4x256xf32>
    %71 = vector.shape_cast %70 : vector<1x4x256xf32> to vector<4x256xf32>
    %72 = vector.shape_cast %69 : vector<4x256xf32> to vector<1x4x256xf32>
    tpu.vector_store %arg4[%c0_29, %c0_30, %c0_31], %72 {strides = array<i32>} : memref<1x4x256xf32, #tpu.memory_space<vmem>>, vector<1x4x256xf32>,
    %cst_32 = arith.constant dense<0.000000e+00> : vector<4xf32>
    %73 = vector.multi_reduction <add>, %69, %cst_32 [1] : vector<4x256xf32> to vector<4xf32>
    %74 = vector.shape_cast %73 : vector<4xf32> to vector<4x1xf32>
    %75 = arith.mulf %69, %69 : vector<4x256xf32>
    %cst_33 = arith.constant dense<0.000000e+00> : vector<4xf32>
    %76 = vector.multi_reduction <add>, %75, %cst_33 [1] : vector<4x256xf32> to vector<4xf32>
    %77 = vector.shape_cast %76 : vector<4xf32> to vector<4x1xf32>
    %78 = tpu.concatenate %74, %77 in 1 : vector<4x1xf32>, vector<4x1xf32> -> vector<4x2xf32>
    %c0_34 = arith.constant 0 : index
    %c0_35 = arith.constant 0 : index
    %c0_36 = arith.constant 0 : index
    %79 = vector.load %arg5[%c0_34, %c0_35, %c0_36] : memref<1x4x2xf32, #tpu.memory_space<vmem>>, vector<1x4x2xf32>
    %80 = vector.shape_cast %79 : vector<1x4x2xf32> to vector<4x2xf32>
    %81 = vector.shape_cast %78 : vector<4x2xf32> to vector<1x4x2xf32>
    tpu.vector_store %arg5[%c0_34, %c0_35, %c0_36], %81 {strides = array<i32>} : memref<1x4x2xf32, #tpu.memory_space<vmem>>, vector<1x4x2xf32>,
    return
  }
  func.func @transform_0(%arg0: i32) -> (i32, i32, i32) {
    %c0_i32 = arith.constant 0 : i32
    %c0_i32_0 = arith.constant 0 : i32
    %c0_i32_1 = arith.constant 0 : i32
    return %arg0, %c0_i32, %c0_i32_0 : i32, i32, i32
  }
  func.func @transform_1(%arg0: i32) -> (i32, i32) {
    %c0_i32 = arith.constant 0 : i32
    %c0_i32_0 = arith.constant 0 : i32
    %c0_i32_1 = arith.constant 0 : i32
    return %c0_i32, %c0_i32_0 : i32, i32
  }
  func.func @transform_2(%arg0: i32) -> (i32, i32) {
    %c0_i32 = arith.constant 0 : i32
    %c0_i32_0 = arith.constant 0 : i32
    %c0_i32_1 = arith.constant 0 : i32
    return %c0_i32, %c0_i32_0 : i32, i32
  }
  func.func @transform_3(%arg0: i32) -> (i32, i32, i32) {
    %c0_i32 = arith.constant 0 : i32
    %c0_i32_0 = arith.constant 0 : i32
    %c0_i32_1 = arith.constant 0 : i32
    return %arg0, %c0_i32, %c0_i32_0 : i32, i32, i32
  }
  func.func @transform_4(%arg0: i32) -> (i32, i32, i32) {
    %c0_i32 = arith.constant 0 : i32
    %c0_i32_0 = arith.constant 0 : i32
    %c0_i32_1 = arith.constant 0 : i32
    return %arg0, %c0_i32, %c0_i32_0 : i32, i32, i32
  }
}

</mosaic_0001>

<llo_original>
// kernel: basic_block_forward.5
$region0: #{basic_block_forward.5}
  #allocation0 [shape = 'u32[]', space=smem, size = 0x4, offset = 0x4, fixed_abs, tag = 'smem constant byte address 0x4 - core index']
  #allocation1 [shape = 'u32[144,128]{1,0:T(1,128)}', space=vmem, size = 0x12000, scoped, tag = 'internal scratch']
  %s0 = inlined_call_operand.vmem [shape: f32[2,4,256], index: 0, kind: input, shape index: {}]
  %s1 = inlined_call_operand.vmem [shape: f32[2,4,256], index: 1, kind: input, shape index: {}]
  %s2 = inlined_call_operand.vmem [shape: f32[4,1], index: 2, kind: input, shape index: {}]
  %s3 = inlined_call_operand.vmem [shape: f32[4,1], index: 3, kind: input, shape index: {}]
  %s4 = inlined_call_operand.vmem [shape: f32[2,4,256], index: 4, kind: output, shape index: {}]
  %s5 = sld [smem:[#allocation0]]
  $region49: #{basic_block_forward.5} parent=0
    _
  %s7 = ssub.s32 1, %s5
  %s8 = scalar_select 0, %s7, %s5
  loop: start=0, step=1, limit=4
  $region2: #{basic_block_forward.5} parent=0 // loop_pre_header
    _
  $region3: #{basic_block_forward.5} parent=0 // loop_header
    %s10 = sphi 0, %s14
    %p11 = scmp.ge.s32.totalorder %s10, 4
    %s20 = sphi 0, %s22
    %s23 = sphi 0, %s20
    %s24 = sphi 0, %s23
    %s40 = sphi 0, %s24
    %s46 = sphi 0, %s48
    %s49 = sphi 0, %s46
    %s50 = sphi 0, %s49
    %s66 = sphi 0, %s50
    %s70 = sphi 0, %s70
    %s72 = sphi 0, %s70
    %s73 = sphi 0, %s72
    %s87 = sphi 0, %s73
    %s91 = sphi 0, %s91
    %s93 = sphi 0, %s91
    %s94 = sphi 0, %s93
    %s108 = sphi 0, %s94
    %s114 = sphi 0, %s116
    %s117 = sphi 0, %s114
    %s118 = sphi 0, %s117
    %s134 = sphi 0, %s118
  $region4: #{basic_block_forward.5} parent=0 // loop_header_branch
    %13 = sbr.rel (%p11) target = $region8
  $region5: #{basic_block_forward.5} parent=0 // loop_body
    %s15 = ssub.s32 %s10, 1
    %s16 = ssub.s32 %s10, 2
    %s17 = sadd.s32 %s10, 1
    %s18 = ssub.s32 %s10, %s17
    %p19 = scmp.eq.s32.totalorder %s18, 0
    %s21 = sadd.s32 %s20, 1
    %s22 = scalar_select %p19, %s20, %s21
    %p25 = pneg %p19
    %p26 = scmp.eq.s32.totalorder %s10, 1
    %p27 = por %p25, %p26
    %p28 = scmp.ne.s32.totalorder %s20, %s23
    %p29 = scmp.eq.s32.totalorder %s10, 0
    %p30 = por %p28, %p29
    %p31 = scmp.ne.s32.totalorder %s20, %s23
    %p32 = scmp.eq.s32.totalorder %s15, 1
    %p33 = por %p31, %p32
    %p34 = scmp.ne.s32.totalorder %s23, %s24
    %p35 = scmp.eq.s32.totalorder %s15, 0
    %p36 = por %p34, %p35
    %p37 = scmp.ne.s32.totalorder %s23, %s24
    %p38 = scmp.eq.s32.totalorder %s16, 1
    %p39 = por %p37, %p38
    %p41 = scmp.ne.s32.totalorder %s24, %s40
    %p42 = scmp.eq.s32.totalorder %s16, 0
    %p43 = por %p41, %p42
    %s44 = ssub.s32 %s10, %s17
    %p45 = scmp.eq.s32.totalorder %s44, 0
    %s47 = sadd.s32 %s46, 1
    %s48 = scalar_select %p45, %s46, %s47
    %p51 = pneg %p45
    %p52 = scmp.eq.s32.totalorder %s10, 1
    %p53 = por %p51, %p52
    %p54 = scmp.ne.s32.totalorder %s46, %s49
    %p55 = scmp.eq.s32.totalorder %s10, 0
    %p56 = por %p54, %p55
    %p57 = scmp.ne.s32.totalorder %s46, %s49
    %p58 = scmp.eq.s32.totalorder %s15, 1
    %p59 = por %p57, %p58
    %p60 = scmp.ne.s32.totalorder %s49, %s50
    %p61 = scmp.eq.s32.totalorder %s15, 0
    %p62 = por %p60, %p61
    %p63 = scmp.ne.s32.totalorder %s49, %s50
    %p64 = scmp.eq.s32.totalorder %s16, 1
    %p65 = por %p63, %p64
    %p67 = scmp.ne.s32.totalorder %s50, %s66
    %p68 = scmp.eq.s32.totalorder %s16, 0
    %p69 = por %p67, %p68
    %s71 = sadd.s32 %s70, 1
    %p74 = scmp.eq.s32.totalorder %s10, 1
    %p75 = scmp.ne.s32.totalorder %s70, %s72
    %p76 = scmp.eq.s32.totalorder %s10, 0
    %p77 = por %p75, %p76
    %p78 = scmp.ne.s32.totalorder %s70, %s72
    %p79 = scmp.eq.s32.totalorder %s15, 1
    %p80 = por %p78, %p79
    %p81 = scmp.ne.s32.totalorder %s72, %s73
    %p82 = scmp.eq.s32.totalorder %s15, 0
    %p83 = por %p81, %p82
    %p84 = scmp.ne.s32.totalorder %s72, %s73
    %p85 = scmp.eq.s32.totalorder %s16, 1
    %p86 = por %p84, %p85
    %p88 = scmp.ne.s32.totalorder %s73, %s87
    %p89 = scmp.eq.s32.totalorder %s16, 0
    %p90 = por %p88, %p89
    %s92 = sadd.s32 %s91, 1
    %p95 = scmp.eq.s32.totalorder %s10, 1
    %p96 = scmp.ne.s32.totalorder %s91, %s93
    %p97 = scmp.eq.s32.totalorder %s10, 0
    %p98 = por %p96, %p97
    %p99 = scmp.ne.s32.totalorder %s91, %s93
    %p100 = scmp.eq.s32.totalorder %s15, 1
    %p101 = por %p99, %p100
    %p102 = scmp.ne.s32.totalorder %s93, %s94
    %p103 = scmp.eq.s32.totalorder %s15, 0
    %p104 = por %p102, %p103
    %p105 = scmp.ne.s32.totalorder %s93, %s94
    %p106 = scmp.eq.s32.totalorder %s16, 1
    %p107 = por %p105, %p106
    %p109 = scmp.ne.s32.totalorder %s94, %s108
    %p110 = scmp.eq.s32.totalorder %s16, 0
    %p111 = por %p109, %p110
    %s112 = ssub.s32 %s10, %s17
    %p113 = scmp.eq.s32.totalorder %s112, 0
    %s115 = sadd.s32 %s114, 1
    %s116 = scalar_select %p113, %s114, %s115
    %p119 = pneg %p113
    %p120 = scmp.eq.s32.totalorder %s10, 1
    %p121 = por %p119, %p120
    %p122 = scmp.ne.s32.totalorder %s114, %s117
    %p123 = scmp.eq.s32.totalorder %s10, 0
    %p124 = por %p122, %p123
    %p125 = scmp.ne.s32.totalorder %s114, %s117
    %p126 = scmp.eq.s32.totalorder %s15, 1
    %p127 = por %p125, %p126
    %p128 = scmp.ne.s32.totalorder %s117, %s118
    %p129 = scmp.eq.s32.totalorder %s15, 0
    %p130 = por %p128, %p129
    %p131 = scmp.ne.s32.totalorder %s117, %s118
    %p132 = scmp.eq.s32.totalorder %s16, 1
    %p133 = por %p131, %p132
    %p135 = scmp.ne.s32.totalorder %s118, %s134
    %p136 = scmp.eq.s32.totalorder %s16, 0
    %p137 = por %p135, %p136
    %p138 = scmp.le.s32.totalorder 1, %s10
    %p139 = scmp.lt.s32.totalorder %s10, 3
    %p140 = pnand %p138, %p139
    %p141 = pneg %p140
    // Predicated region
    $region9: #{basic_block_forward.5} parent=5 // pred_check
      _
    $region10: #{basic_block_forward.5} parent=5 // pred_check_branch
      %143 = sbr.rel (%p140) target = $region12
    $region11: #{basic_block_forward.5} parent=5 // pred_region
      %s144 = ssub.s32 %s10, 1
      // Predicated region
      $region13: #{basic_block_forward.5} parent=11 // pred_check
        %p145 = pneg %p83
      $region14: #{basic_block_forward.5} parent=11 // pred_check_branch
        %147 = sbr.rel (%p145) target = $region16
      $region15: #{basic_block_forward.5} parent=11 // pred_region
        _
      $region16: #{basic_block_forward.5} parent=11 // pred_fallthru
        _
      // Predicated region
      $region17: #{basic_block_forward.5} parent=11 // pred_check
        %p148 = pneg %p104
      $region18: #{basic_block_forward.5} parent=11 // pred_check_branch
        %150 = sbr.rel (%p148) target = $region20
      $region19: #{basic_block_forward.5} parent=11 // pred_region
        _
      $region20: #{basic_block_forward.5} parent=11 // pred_fallthru
        _
    $region12: #{basic_block_forward.5} parent=5 // pred_fallthru
      _
    %p151 = scmp.lt.s32.totalorder %s10, 2
    // Predicated region
    $region21: #{basic_block_forward.5} parent=5 // pred_check
      %p152 = pneg %p151
    $region22: #{basic_block_forward.5} parent=5 // pred_check_branch
      %154 = sbr.rel (%p152) target = $region24
    $region23: #{basic_block_forward.5} parent=5 // pred_region
      // Predicated region
      $region25: #{basic_block_forward.5} parent=23 // pred_check
        %p155 = pneg %p30
      $region26: #{basic_block_forward.5} parent=23 // pred_check_branch
        %157 = sbr.rel (%p155) target = $region28
      $region27: #{basic_block_forward.5} parent=23 // pred_region
        %p158 = scmp.lt.s32.totalorder %s10, 1
        %s159 = scalar_select %p158, %s10, 1
        %s160 = smul.addr %s159, 2
        %s161 = smul.addr %s160, 4
        %s162 = scalar_lea.vmem %s0, %s161
      $region28: #{basic_block_forward.5} parent=23 // pred_fallthru
        _
      // Predicated region
      $region29: #{basic_block_forward.5} parent=23 // pred_check
        %p163 = pneg %p56
      $region30: #{basic_block_forward.5} parent=23 // pred_check_branch
        %165 = sbr.rel (%p163) target = $region32
      $region31: #{basic_block_forward.5} parent=23 // pred_region
        %p166 = scmp.lt.s32.totalorder %s10, 1
        %s167 = scalar_select %p166, %s10, 1
        %s168 = smul.addr %s167, 2
        %s169 = smul.addr %s168, 4
        %s170 = scalar_lea.vmem %s1, %s169
      $region32: #{basic_block_forward.5} parent=23 // pred_fallthru
        _
    $region24: #{basic_block_forward.5} parent=5 // pred_fallthru
      _
    %p171 = scmp.le.s32.totalorder 1, %s10
    %p172 = scmp.lt.s32.totalorder %s10, 3
    %p173 = pnand %p171, %p172
    %p174 = pneg %p173
    // Predicated region
    $region33: #{basic_block_forward.5} parent=5 // pred_check
      _
    $region34: #{basic_block_forward.5} parent=5 // pred_check_branch
      %176 = sbr.rel (%p173) target = $region36
    $region35: #{basic_block_forward.5} parent=5 // pred_region
      %s177 = ssub.s32 %s10, 1
      %p178 = scmp.lt.s32.totalorder %s15, 1
      %s179 = scalar_select %p178, %s15, 1
      %s180 = smul.addr %s179, 2
      %s181 = smul.addr %s180, 4
      %s182 = scalar_lea.vmem %s0, %s181
      %p183 = pneg %p36
      %p184 = pneg %p33
      %p185 = scmp.lt.s32.totalorder %s15, 1
      %s186 = scalar_select %p185, %s15, 1
      %s187 = smul.addr %s186, 2
      %s188 = smul.addr %s187, 4
      %s189 = scalar_lea.vmem %s1, %s188
      %p190 = pneg %p62
      %p191 = pneg %p59
      %p192 = pneg %p83
      %p193 = pneg %p80
      %p194 = pneg %p104
      %p195 = pneg %p101
      %p196 = pneg %p130
      %p197 = pneg %p127
      %p198 = scmp.lt.s32.totalorder %s15, 1
      %s199 = scalar_select %p198, %s15, 1
      %s200 = smul.addr %s199, 2
      %s201 = smul.addr %s200, 4
      %s202 = scalar_lea.vmem %s4, %s201
      %p203 = scmp.lt.s32.totalorder %s15, 1
      %s204 = scalar_select %p203, %s15, 1
      %s205 = smul.addr %s204, 2
      %s206 = smul.addr %s205, 4
      %s207 = scalar_lea.vmem %s0, %s206
      %p208 = scmp.lt.s32.totalorder %s15, 1
      %s209 = scalar_select %p208, %s15, 1
      %s210 = smul.addr %s209, 2
      %s211 = smul.addr %s210, 4
      %s212 = scalar_lea.vmem %s1, %s211
      %p213 = scmp.lt.s32.totalorder %s15, 1
      %s214 = scalar_select %p213, %s15, 1
      %s215 = smul.addr %s214, 2
      %s216 = smul.addr %s215, 4
      %s217 = scalar_lea.vmem %s4, %s216
      %v218 = vld [vmem:[%s207] sm:$0xff]
      %v219 = vld [vmem:[%s2] sm:$0xf]
      %221 = vset.pattern.permute.xlu0 0
      %222 = vperm.xlu0 %221, %v219
      %v223 = vpop.permute.xlu0 %222
      %v225 = vunpack.c.l.s4 839922192
      %v226 = vunpack.c.0.s8 %v225
      %v227 = vlaneseq
      %v228 = vshrl.u32 %v227, 7
      %v229 = vsub.s32 %v226, %v228
      %v230 = vrot.slane %v223, %v229
      %v232 = vmul.f32 %v218, %v230
      %v233 = vld [vmem:[%s3] sm:$0xf]
      %235 = vset.pattern.permute.xlu0 0
      %236 = vperm.xlu0 %235, %v233
      %v237 = vpop.permute.xlu0 %236
      %v239 = vunpack.c.l.s4 839922192
      %v240 = vunpack.c.0.s8 %v239
      %v241 = vlaneseq
      %v242 = vshrl.u32 %v241, 7
      %v243 = vsub.s32 %v240, %v242
      %v244 = vrot.slane %v237, %v243
      %v246 = vadd.f32 %v232, %v244
      %v247 = vld [vmem:[%s212] sm:$0xff]
      %v248 = vadd.f32 %v246, %v247
      %v249 = vmax.f32 %v248, 0.0
      %250 = vst [vmem:[%s217] sm:$0xff] %v249
      %p251 = scmp.lt.s32.totalorder %s15, 1
      %s252 = scalar_select %p251, %s15, 1
      %s253 = smul.addr %s252, 2
      %s254 = smul.addr %s253, 4
      %s255 = scalar_lea.vmem %s4, %s254
      // Predicated region
      $region37: #{basic_block_forward.5} parent=35 // pred_check
        %p256 = pneg %p127
      $region38: #{basic_block_forward.5} parent=35 // pred_check_branch
        %258 = sbr.rel (%p256) target = $region40
      $region39: #{basic_block_forward.5} parent=35 // pred_region
        _
      $region40: #{basic_block_forward.5} parent=35 // pred_fallthru
        _
    $region36: #{basic_block_forward.5} parent=5 // pred_fallthru
      _
    %p259 = scmp.le.s32.totalorder 2, %s10
    // Predicated region
    $region41: #{basic_block_forward.5} parent=5 // pred_check
      %p260 = pneg %p259
    $region42: #{basic_block_forward.5} parent=5 // pred_check_branch
      %262 = sbr.rel (%p260) target = $region44
    $region43: #{basic_block_forward.5} parent=5 // pred_region
      %s263 = ssub.s32 %s10, 2
      // Predicated region
      $region45: #{basic_block_forward.5} parent=43 // pred_check
        %p264 = pneg %p133
      $region46: #{basic_block_forward.5} parent=43 // pred_check_branch
        %266 = sbr.rel (%p264) target = $region48
      $region47: #{basic_block_forward.5} parent=43 // pred_region
        %p267 = scmp.lt.s32.totalorder %s16, 1
        %s268 = scalar_select %p267, %s16, 1
        %s269 = smul.addr %s268, 2
        %s270 = smul.addr %s269, 4
        %s271 = scalar_lea.vmem %s4, %s270
      $region48: #{basic_block_forward.5} parent=43 // pred_fallthru
        _
    $region44: #{basic_block_forward.5} parent=5 // pred_fallthru
      _
  $region6: #{basic_block_forward.5} parent=0 // loop_footer
    %s14 = sadd.s32 1, %s10
  $region7: #{basic_block_forward.5} parent=0 // loop_footer_branch
    %9 = sbr.rel target = $region3
  $region8: #{basic_block_forward.5} parent=0 // loop_exit
    _

// kernel: basic_block_forward.3
$region0: #{basic_block_forward.3}
  #allocation0 [shape = 'u32[]', space=smem, size = 0x4, offset = 0x4, fixed_abs, tag = 'smem constant byte address 0x4 - core index']
  #allocation1 [shape = 'u32[144,128]{1,0:T(1,128)}', space=vmem, size = 0x12000, scoped, tag = 'internal scratch']
  %s0 = inlined_call_operand.vmem [shape: f32[2,4,256], index: 0, kind: input, shape index: {}]
  %s1 = inlined_call_operand.vmem [shape: bf16[4,36], index: 1, kind: input, shape index: {}]
  %s2 = inlined_call_operand.vmem [shape: f32[9,256], index: 2, kind: input, shape index: {}]
  %s3 = inlined_call_operand.vmem [shape: f32[2,4,256], index: 3, kind: output, shape index: {0}]
  %s4 = inlined_call_operand.vmem [shape: f32[2,4,2], index: 4, kind: output, shape index: {1}]
  %5 = xla_tuple %s3, %s4
  %s6 = sld [smem:[#allocation0]]
  $region53: #{basic_block_forward.3} parent=0
    _
  %s8 = ssub.s32 1, %s6
  %s9 = scalar_select 0, %s8, %s6
  loop: start=0, step=1, limit=4
  $region2: #{basic_block_forward.3} parent=0 // loop_pre_header
    _
  $region3: #{basic_block_forward.3} parent=0 // loop_header
    %s11 = sphi 0, %s15
    %p12 = scmp.ge.s32.totalorder %s11, 4
    %s21 = sphi 0, %s23
    %s24 = sphi 0, %s21
    %s25 = sphi 0, %s24
    %s41 = sphi 0, %s25
    %s45 = sphi 0, %s45
    %s47 = sphi 0, %s45
    %s48 = sphi 0, %s47
    %s62 = sphi 0, %s48
    %s66 = sphi 0, %s66
    %s68 = sphi 0, %s66
    %s69 = sphi 0, %s68
    %s83 = sphi 0, %s69
    %s89 = sphi 0, %s91
    %s92 = sphi 0, %s89
    %s93 = sphi 0, %s92
    %s109 = sphi 0, %s93
    %s115 = sphi 0, %s117
    %s118 = sphi 0, %s115
    %s119 = sphi 0, %s118
    %s135 = sphi 0, %s119
  $region4: #{basic_block_forward.3} parent=0 // loop_header_branch
    %14 = sbr.rel (%p12) target = $region8
  $region5: #{basic_block_forward.3} parent=0 // loop_body
    %s16 = ssub.s32 %s11, 1
    %s17 = ssub.s32 %s11, 2
    %s18 = sadd.s32 %s11, 1
    %s19 = ssub.s32 %s11, %s18
    %p20 = scmp.eq.s32.totalorder %s19, 0
    %s22 = sadd.s32 %s21, 1
    %s23 = scalar_select %p20, %s21, %s22
    %p26 = pneg %p20
    %p27 = scmp.eq.s32.totalorder %s11, 1
    %p28 = por %p26, %p27
    %p29 = scmp.ne.s32.totalorder %s21, %s24
    %p30 = scmp.eq.s32.totalorder %s11, 0
    %p31 = por %p29, %p30
    %p32 = scmp.ne.s32.totalorder %s21, %s24
    %p33 = scmp.eq.s32.totalorder %s16, 1
    %p34 = por %p32, %p33
    %p35 = scmp.ne.s32.totalorder %s24, %s25
    %p36 = scmp.eq.s32.totalorder %s16, 0
    %p37 = por %p35, %p36
    %p38 = scmp.ne.s32.totalorder %s24, %s25
    %p39 = scmp.eq.s32.totalorder %s17, 1
    %p40 = por %p38, %p39
    %p42 = scmp.ne.s32.totalorder %s25, %s41
    %p43 = scmp.eq.s32.totalorder %s17, 0
    %p44 = por %p42, %p43
    %s46 = sadd.s32 %s45, 1
    %p49 = scmp.eq.s32.totalorder %s11, 1
    %p50 = scmp.ne.s32.totalorder %s45, %s47
    %p51 = scmp.eq.s32.totalorder %s11, 0
    %p52 = por %p50, %p51
    %p53 = scmp.ne.s32.totalorder %s45, %s47
    %p54 = scmp.eq.s32.totalorder %s16, 1
    %p55 = por %p53, %p54
    %p56 = scmp.ne.s32.totalorder %s47, %s48
    %p57 = scmp.eq.s32.totalorder %s16, 0
    %p58 = por %p56, %p57
    %p59 = scmp.ne.s32.totalorder %s47, %s48
    %p60 = scmp.eq.s32.totalorder %s17, 1
    %p61 = por %p59, %p60
    %p63 = scmp.ne.s32.totalorder %s48, %s62
    %p64 = scmp.eq.s32.totalorder %s17, 0
    %p65 = por %p63, %p64
    %s67 = sadd.s32 %s66, 1
    %p70 = scmp.eq.s32.totalorder %s11, 1
    %p71 = scmp.ne.s32.totalorder %s66, %s68
    %p72 = scmp.eq.s32.totalorder %s11, 0
    %p73 = por %p71, %p72
    %p74 = scmp.ne.s32.totalorder %s66, %s68
    %p75 = scmp.eq.s32.totalorder %s16, 1
    %p76 = por %p74, %p75
    %p77 = scmp.ne.s32.totalorder %s68, %s69
    %p78 = scmp.eq.s32.totalorder %s16, 0
    %p79 = por %p77, %p78
    %p80 = scmp.ne.s32.totalorder %s68, %s69
    %p81 = scmp.eq.s32.totalorder %s17, 1
    %p82 = por %p80, %p81
    %p84 = scmp.ne.s32.totalorder %s69, %s83
    %p85 = scmp.eq.s32.totalorder %s17, 0
    %p86 = por %p84, %p85
    %s87 = ssub.s32 %s11, %s18
    %p88 = scmp.eq.s32.totalorder %s87, 0
    %s90 = sadd.s32 %s89, 1
    %s91 = scalar_select %p88, %s89, %s90
    %p94 = pneg %p88
    %p95 = scmp.eq.s32.totalorder %s11, 1
    %p96 = por %p94, %p95
    %p97 = scmp.ne.s32.totalorder %s89, %s92
    %p98 = scmp.eq.s32.totalorder %s11, 0
    %p99 = por %p97, %p98
    %p100 = scmp.ne.s32.totalorder %s89, %s92
    %p101 = scmp.eq.s32.totalorder %s16, 1
    %p102 = por %p100, %p101
    %p103 = scmp.ne.s32.totalorder %s92, %s93
    %p104 = scmp.eq.s32.totalorder %s16, 0
    %p105 = por %p103, %p104
    %p106 = scmp.ne.s32.totalorder %s92, %s93
    %p107 = scmp.eq.s32.totalorder %s17, 1
    %p108 = por %p106, %p107
    %p110 = scmp.ne.s32.totalorder %s93, %s109
    %p111 = scmp.eq.s32.totalorder %s17, 0
    %p112 = por %p110, %p111
    %s113 = ssub.s32 %s11, %s18
    %p114 = scmp.eq.s32.totalorder %s113, 0
    %s116 = sadd.s32 %s115, 1
    %s117 = scalar_select %p114, %s115, %s116
    %p120 = pneg %p114
    %p121 = scmp.eq.s32.totalorder %s11, 1
    %p122 = por %p120, %p121
    %p123 = scmp.ne.s32.totalorder %s115, %s118
    %p124 = scmp.eq.s32.totalorder %s11, 0
    %p125 = por %p123, %p124
    %p126 = scmp.ne.s32.totalorder %s115, %s118
    %p127 = scmp.eq.s32.totalorder %s16, 1
    %p128 = por %p126, %p127
    %p129 = scmp.ne.s32.totalorder %s118, %s119
    %p130 = scmp.eq.s32.totalorder %s16, 0
    %p131 = por %p129, %p130
    %p132 = scmp.ne.s32.totalorder %s118, %s119
    %p133 = scmp.eq.s32.totalorder %s17, 1
    %p134 = por %p132, %p133
    %p136 = scmp.ne.s32.totalorder %s119, %s135
    %p137 = scmp.eq.s32.totalorder %s17, 0
    %p138 = por %p136, %p137
    %p139 = scmp.le.s32.totalorder 1, %s11
    %p140 = scmp.lt.s32.totalorder %s11, 3
    %p141 = pnand %p139, %p140
    %p142 = pneg %p141
    // Predicated region
    $region9: #{basic_block_forward.3} parent=5 // pred_check
      _
    $region10: #{basic_block_forward.3} parent=5 // pred_check_branch
      %144 = sbr.rel (%p141) target = $region12
    $region11: #{basic_block_forward.3} parent=5 // pred_region
      %s145 = ssub.s32 %s11, 1
      // Predicated region
      $region13: #{basic_block_forward.3} parent=11 // pred_check
        %p146 = pneg %p58
      $region14: #{basic_block_forward.3} parent=11 // pred_check_branch
        %148 = sbr.rel (%p146) target = $region16
      $region15: #{basic_block_forward.3} parent=11 // pred_region
        _
      $region16: #{basic_block_forward.3} parent=11 // pred_fallthru
        _
      // Predicated region
      $region17: #{basic_block_forward.3} parent=11 // pred_check
        %p149 = pneg %p79
      $region18: #{basic_block_forward.3} parent=11 // pred_check_branch
        %151 = sbr.rel (%p149) target = $region20
      $region19: #{basic_block_forward.3} parent=11 // pred_region
        _
      $region20: #{basic_block_forward.3} parent=11 // pred_fallthru
        _
    $region12: #{basic_block_forward.3} parent=5 // pred_fallthru
      _
    %p152 = scmp.lt.s32.totalorder %s11, 2
    // Predicated region
    $region21: #{basic_block_forward.3} parent=5 // pred_check
      %p153 = pneg %p152
    $region22: #{basic_block_forward.3} parent=5 // pred_check_branch
      %155 = sbr.rel (%p153) target = $region24
    $region23: #{basic_block_forward.3} parent=5 // pred_region
      // Predicated region
      $region25: #{basic_block_forward.3} parent=23 // pred_check
        %p156 = pneg %p31
      $region26: #{basic_block_forward.3} parent=23 // pred_check_branch
        %158 = sbr.rel (%p156) target = $region28
      $region27: #{basic_block_forward.3} parent=23 // pred_region
        %p159 = scmp.lt.s32.totalorder %s11, 1
        %s160 = scalar_select %p159, %s11, 1
        %s161 = smul.addr %s160, 2
        %s162 = smul.addr %s161, 4
        %s163 = scalar_lea.vmem %s0, %s162
      $region28: #{basic_block_forward.3} parent=23 // pred_fallthru
        _
    $region24: #{basic_block_forward.3} parent=5 // pred_fallthru
      _
    %p164 = scmp.le.s32.totalorder 1, %s11
    %p165 = scmp.lt.s32.totalorder %s11, 3
    %p166 = pnand %p164, %p165
    %p167 = pneg %p166
    // Predicated region
    $region29: #{basic_block_forward.3} parent=5 // pred_check
      _
    $region30: #{basic_block_forward.3} parent=5 // pred_check_branch
      %169 = sbr.rel (%p166) target = $region32
    $region31: #{basic_block_forward.3} parent=5 // pred_region
      %s170 = ssub.s32 %s11, 1
      %p171 = scmp.lt.s32.totalorder %s16, 1
      %s172 = scalar_select %p171, %s16, 1
      %s173 = smul.addr %s172, 2
      %s174 = smul.addr %s173, 4
      %s175 = scalar_lea.vmem %s0, %s174
      %p176 = pneg %p37
      %p177 = pneg %p34
      %p178 = pneg %p58
      %p179 = pneg %p55
      %p180 = pneg %p79
      %p181 = pneg %p76
      %p182 = pneg %p105
      %p183 = pneg %p102
      %p184 = scmp.lt.s32.totalorder %s16, 1
      %s185 = scalar_select %p184, %s16, 1
      %s186 = smul.addr %s185, 2
      %s187 = smul.addr %s186, 4
      %s188 = scalar_lea.vmem %s3, %s187
      %p189 = pneg %p131
      %p190 = pneg %p128
      %p191 = scmp.lt.s32.totalorder %s16, 1
      %s192 = scalar_select %p191, %s16, 1
      %s193 = smul.addr %s192, 4
      %s194 = scalar_lea.vmem %s4, %s193
      %p195 = scmp.lt.s32.totalorder %s16, 1
      %s196 = scalar_select %p195, %s16, 1
      %s197 = smul.addr %s196, 2
      %s198 = smul.addr %s197, 4
      %s199 = scalar_lea.vmem %s0, %s198
      %p200 = scmp.lt.s32.totalorder %s16, 1
      %s201 = scalar_select %p200, %s16, 1
      %s202 = smul.addr %s201, 2
      %s203 = smul.addr %s202, 4
      %s204 = scalar_lea.vmem %s3, %s203
      %p205 = scmp.lt.s32.totalorder %s16, 1
      %s206 = scalar_select %p205, %s16, 1
      %s207 = smul.addr %s206, 4
      %s208 = scalar_lea.vmem %s4, %s207
      %v210 = vld [vmem:[%s199] sm:$0xff]
      %v212 = vcombine.high %v210, %v210
      %214 = vrot.lane.b32.xlu0 %v210, 17
      %v215 = vpop.permute.xlu0 %214
      %216 = vrot.lane.b32.xlu0 %v212, 17
      %v217 = vpop.permute.xlu0 %216
      %v218 = vlaneseq
      %v219 = vand.u32 %v218, 127
      %vm220 = vcmp.lt.s32.totalorder %v219, 17
      %v221 = vsel %vm220, %v215, %v217
      %v222 = vsel %vm220, %v217, %v215
      %v223 = vld [vmem:[%s2] ss:$8 sm:$0x3]
      %vm224 = vcmp.ne.f32.partialorder %v223, 0.0
      %v225 = vsel %vm224, 1, 0
      %v226 = vlaneseq
      %v227 = vshrl.u32 %v226, 7
      %v228 = vsub.s32 0, %v227
      %v229 = vrot.slane %v225, %v228
      %v230 = vlaneseq
      %v231 = vshrl.u32 %v230, 7
      %v232 = vsub.s32 1, %v231
      %v233 = vrot.slane %v225, %v232
      %vm234 = vcmp.eq.s32.totalorder %v229, 1
      %vm235 = vcmp.eq.s32.totalorder %v233, 1
      %v236 = vsel %vm234, %v222, 0.0
      %v237 = vsel %vm235, %v221, 0.0
      %238 = vrot.lane.b32.xlu0 %v210, 16
      %v239 = vpop.permute.xlu0 %238
      %240 = vrot.lane.b32.xlu0 %v212, 16
      %v241 = vpop.permute.xlu0 %240
      %vm242 = vcmp.lt.s32.totalorder %v219, 16
      %v243 = vsel %vm242, %v239, %v241
      %v244 = vsel %vm242, %v241, %v239
      %s245 = scalar_lea.vmem %s2, 1
      %v246 = vld [vmem:[%s245] ss:$8 sm:$0x3]
      %vm247 = vcmp.ne.f32.partialorder %v246, 0.0
      %v248 = vsel %vm247, 1, 0
      %v249 = vlaneseq
      %v250 = vshrl.u32 %v249, 7
      %v251 = vsub.s32 0, %v250
      %v252 = vrot.slane %v248, %v251
      %v253 = vlaneseq
      %v254 = vshrl.u32 %v253, 7
      %v255 = vsub.s32 1, %v254
      %v256 = vrot.slane %v248, %v255
      %vm257 = vcmp.eq.s32.totalorder %v252, 1
      %vm258 = vcmp.eq.s32.totalorder %v256, 1
      %v259 = vsel %vm257, %v244, 0.0
      %v260 = vsel %vm258, %v243, 0.0
      %261 = vrot.lane.b32.xlu0 %v210, 15
      %v262 = vpop.permute.xlu0 %261
      %263 = vrot.lane.b32.xlu0 %v212, 15
      %v264 = vpop.permute.xlu0 %263
      %vm265 = vcmp.lt.s32.totalorder %v219, 15
      %v266 = vsel %vm265, %v262, %v264
      %v267 = vsel %vm265, %v264, %v262
      %s268 = scalar_lea.vmem %s2, 2
      %v269 = vld [vmem:[%s268] ss:$8 sm:$0x3]
      %vm270 = vcmp.ne.f32.partialorder %v269, 0.0
      %v271 = vsel %vm270, 1, 0
      %v272 = vlaneseq
      %v273 = vshrl.u32 %v272, 7
      %v274 = vsub.s32 0, %v273
      %v275 = vrot.slane %v271, %v274
      %v276 = vlaneseq
      %v277 = vshrl.u32 %v276, 7
      %v278 = vsub.s32 1, %v277
      %v279 = vrot.slane %v271, %v278
      %vm280 = vcmp.eq.s32.totalorder %v275, 1
      %vm281 = vcmp.eq.s32.totalorder %v279, 1
      %v282 = vsel %vm280, %v267, 0.0
      %v283 = vsel %vm281, %v266, 0.0
      %284 = vrot.lane.b32.xlu0 %v210, 1
      %v285 = vpop.permute.xlu0 %284
      %286 = vrot.lane.b32.xlu0 %v212, 1
      %v287 = vpop.permute.xlu0 %286
      %vm288 = vcmp.lt.s32.totalorder %v219, 1
      %v289 = vsel %vm288, %v285, %v287
      %v290 = vsel %vm288, %v287, %v285
      %s291 = scalar_lea.vmem %s2, 3
      %v292 = vld [vmem:[%s291] ss:$8 sm:$0x3]
      %vm293 = vcmp.ne.f32.partialorder %v292, 0.0
      %v294 = vsel %vm293, 1, 0
      %v295 = vlaneseq
      %v296 = vshrl.u32 %v295, 7
      %v297 = vsub.s32 0, %v296
      %v298 = vrot.slane %v294, %v297
      %v299 = vlaneseq
      %v300 = vshrl.u32 %v299, 7
      %v301 = vsub.s32 1, %v300
      %v302 = vrot.slane %v294, %v301
      %vm303 = vcmp.eq.s32.totalorder %v298, 1
      %vm304 = vcmp.eq.s32.totalorder %v302, 1
      %v305 = vsel %vm303, %v290, 0.0
      %v306 = vsel %vm304, %v289, 0.0
      %307 = vrot.lane.b32.xlu0 %v210, 127
      %v308 = vpop.permute.xlu0 %307
      %309 = vrot.lane.b32.xlu0 %v212, 127
      %v310 = vpop.permute.xlu0 %309
      %vm311 = vcmp.lt.s32.totalorder %v219, 127
      %v312 = vsel %vm311, %v308, %v310
      %v313 = vsel %vm311, %v310, %v308
      %s314 = scalar_lea.vmem %s2, 5
      %v315 = vld [vmem:[%s314] ss:$8 sm:$0x3]
      %vm316 = vcmp.ne.f32.partialorder %v315, 0.0
      %v317 = vsel %vm316, 1, 0
      %v318 = vlaneseq
      %v319 = vshrl.u32 %v318, 7
      %v320 = vsub.s32 0, %v319
      %v321 = vrot.slane %v317, %v320
      %v322 = vlaneseq
      %v323 = vshrl.u32 %v322, 7
      %v324 = vsub.s32 1, %v323
      %v325 = vrot.slane %v317, %v324
      %vm326 = vcmp.eq.s32.totalorder %v321, 1
      %vm327 = vcmp.eq.s32.totalorder %v325, 1
      %v328 = vsel %vm326, %v312, 0.0
      %v329 = vsel %vm327, %v313, 0.0
      %330 = vrot.lane.b32.xlu0 %v210, 113
      %v331 = vpop.permute.xlu0 %330
      %332 = vrot.lane.b32.xlu0 %v212, 113
      %v333 = vpop.permute.xlu0 %332
      %vm334 = vcmp.lt.s32.totalorder %v219, 113
      %v335 = vsel %vm334, %v331, %v333
      %v336 = vsel %vm334, %v333, %v331
      %s337 = scalar_lea.vmem %s2, 6
      %v338 = vld [vmem:[%s337] ss:$8 sm:$0x3]
      %vm339 = vcmp.ne.f32.partialorder %v338, 0.0
      %v340 = vsel %vm339, 1, 0
      %v341 = vlaneseq
      %v342 = vshrl.u32 %v341, 7
      %v343 = vsub.s32 0, %v342
      %v344 = vrot.slane %v340, %v343
      %v345 = vlaneseq
      %v346 = vshrl.u32 %v345, 7
      %v347 = vsub.s32 1, %v346
      %v348 = vrot.slane %v340, %v347
      %vm349 = vcmp.eq.s32.totalorder %v344, 1
      %vm350 = vcmp.eq.s32.totalorder %v348, 1
      %v351 = vsel %vm349, %v335, 0.0
      %v352 = vsel %vm350, %v336, 0.0
      %353 = vrot.lane.b32.xlu0 %v210, 112
      %v354 = vpop.permute.xlu0 %353
      %355 = vrot.lane.b32.xlu0 %v212, 112
      %v356 = vpop.permute.xlu0 %355
      %vm357 = vcmp.lt.s32.totalorder %v219, 112
      %v358 = vsel %vm357, %v354, %v356
      %v359 = vsel %vm357, %v356, %v354
      %s360 = scalar_lea.vmem %s2, 7
      %v361 = vld [vmem:[%s360] ss:$8 sm:$0x3]
      %vm362 = vcmp.ne.f32.partialorder %v361, 0.0
      %v363 = vsel %vm362, 1, 0
      %v364 = vlaneseq
      %v365 = vshrl.u32 %v364, 7
      %v366 = vsub.s32 0, %v365
      %v367 = vrot.slane %v363, %v366
      %v368 = vlaneseq
      %v369 = vshrl.u32 %v368, 7
      %v370 = vsub.s32 1, %v369
      %v371 = vrot.slane %v363, %v370
      %vm372 = vcmp.eq.s32.totalorder %v367, 1
      %vm373 = vcmp.eq.s32.totalorder %v371, 1
      %v374 = vsel %vm372, %v358, 0.0
      %v375 = vsel %vm373, %v359, 0.0
      %376 = vrot.lane.b32.xlu0 %v210, 111
      %v377 = vpop.permute.xlu0 %376
      %378 = vrot.lane.b32.xlu0 %v212, 111
      %v379 = vpop.permute.xlu0 %378
      %vm380 = vcmp.lt.s32.totalorder %v219, 111
      %v381 = vsel %vm380, %v377, %v379
      %v382 = vsel %vm380, %v379, %v377
      %s383 = scalar_lea.vmem %s2, 16
      %v384 = vld [vmem:[%s383] ss:$8 sm:$0x3]
      %vm385 = vcmp.ne.f32.partialorder %v384, 0.0
      %v386 = vsel %vm385, 1, 0
      %v387 = vlaneseq
      %v388 = vshrl.u32 %v387, 7
      %v389 = vsub.s32 0, %v388
      %v390 = vrot.slane %v386, %v389
      %v391 = vlaneseq
      %v392 = vshrl.u32 %v391, 7
      %v393 = vsub.s32 1, %v392
      %v394 = vrot.slane %v386, %v393
      %vm395 = vcmp.eq.s32.totalorder %v390, 1
      %vm396 = vcmp.eq.s32.totalorder %v394, 1
      %v397 = vsel %vm395, %v381, 0.0
      %v398 = vsel %vm396, %v382, 0.0
      %v401 = vrot.slane %v259, 4
      %v402 = vrot.slane %v260, 4
      %v407 = vrot.slane %v305, 4
      %v408 = vrot.slane %v306, 4
      %v413 = vrot.slane %v328, 4
      %v414 = vrot.slane %v329, 4
      %v419 = vrot.slane %v374, 4
      %v420 = vrot.slane %v375, 4
      %vm423 = vcmask 1043456
      %v424 = vsel %vm423, %v236, %v401
      %v425 = vsel %vm423, %v237, %v402
      %v426 = vsel %vm423, %v282, %v407
      %v427 = vsel %vm423, %v283, %v408
      %v428 = vsel %vm423, %v210, %v413
      %v429 = vsel %vm423, %v212, %v414
      %v430 = vsel %vm423, %v351, %v419
      %v431 = vsel %vm423, %v352, %v420
      %v432 = vpack.c.bf16 %v426, %v424
      %v433 = vpack.c.bf16 %v427, %v425
      %v434 = vpack.c.bf16 %v430, %v428
      %v435 = vpack.c.bf16 %v431, %v429
      %v436 = vpack.c.bf16 %v397, %v397
      %v437 = vpack.c.bf16 %v398, %v398
      %v438 = vld [vmem:[%s1] sm:$0x3]
      %vm439 = vcmask 293888
      %v441 = vsel %vm439, %v438, 0
      %vm443 = vcmask 1041408
      %v445 = vsel %vm443, %v436, 0
      %v448 = vsel %vm443, %v437, 0
      %450 = vmatprep.subr.bf16.mxu0 %v433
      %451 = vmatpush1.bf16.msra.mxu0 %v432
      %452 = vmatprep.subr.bf16.mxu0 %v435
      %453 = vmatpush1.bf16.msra.mxu0 %v434
      %454 = vmatprep.subr.bf16.mxu0 %v448
      %455 = vmatpush1.bf16.msra.mxu0 %v445
      %456 = vmatprep.subr.bf16.mxu0 0
      %457 = vmatpush1.bf16.msra.mxu0 0
      %458 = vmatprep.subr.bf16.mxu0 0
      %459 = vmatpush1.bf16.msra.mxu0 0
      %460 = vmatprep.subr.bf16.mxu0 0
      %461 = vmatpush1.bf16.msra.mxu0 0
      %462 = vmatprep.subr.bf16.mxu0 0
      %463 = vmatpush1.bf16.msra.mxu0 0
      %464 = vmatprep.subr.bf16.mxu0 0
      %465 = vmatpush1.bf16.msra.mxu0 0
      %466 = vmatprep.subr.bf16.mxu0 0
      %467 = vmatpush1.bf16.msra.mxu0 0
      %468 = vmatprep.subr.bf16.mxu0 0
      %469 = vmatpush1.bf16.msra.mxu0 0
      %470 = vmatprep.subr.bf16.mxu0 0
      %471 = vmatpush1.bf16.msra.mxu0 0
      %472 = vmatprep.subr.bf16.mxu0 0
      %473 = vmatpush1.bf16.msra.mxu0 0
      %474 = vmatprep.subr.bf16.mxu0 0
      %475 = vmatpush1.bf16.msra.mxu0 0
      %476 = vmatprep.subr.bf16.mxu0 0
      %477 = vmatpush1.bf16.msra.mxu0 0
      %478 = vmatprep.subr.bf16.mxu0 0
      %479 = vmatpush1.bf16.msra.mxu0 0
      %480 = vmatprep.subr.bf16.mxu0 0
      %481 = vmatpush1.bf16.msra.mxu0 0
      %482 = vmatprep.mubr.bf16.mxu0 0
      %483 = vmatmul.mubr.bf16.gmra.mrb[0].mxu0 %v441
      %v484 = vpop.f32.mrb[0].mxu0
      %v485 = vadd.f32 0.0, %v484
      %v486 = vpop.f32.mrb[0].mxu0
      %v487 = vadd.f32 0.0, %v486
      %v488 = vpop.f32.mrb[0].mxu0
      %v489 = vpop.f32.mrb[0].mxu0
      %490 = vdwg.mxu0
      %v493 = vcombine.low %v485, %v487
      %495 = vst [vmem:[%s204] sm:$0xff] %v493
      %v496 = vsel %vm423, %v485, 0.0
      %v497 = vsel %vm423, %v487, 0.0
      %v498 = vadd.f32 %v496, %v497
      %499 = vadd.xlane.f32.xlu0 %v498
      %v500 = vpop.xlane.xlu0 %499
      %v501 = vmul.f32 %v485, %v485
      %v502 = vmul.f32 %v487, %v487
      %v503 = vsel %vm423, %v501, 0.0
      %v504 = vsel %vm423, %v502, 0.0
      %v505 = vadd.f32 %v503, %v504
      %506 = vadd.xlane.f32.xlu0 %v505
      %v507 = vpop.xlane.xlu0 %506
      %vm508 = vcmask 7168
      %v509 = vsel %vm508, %v500, %v507
      %vm510 = vcmask 11264
      %511 = vst.msk [vmem:[%s208] sm:$0xf] %vm510, %v509
      %p512 = scmp.lt.s32.totalorder %s16, 1
      %s513 = scalar_select %p512, %s16, 1
      %s514 = smul.addr %s513, 2
      %s515 = smul.addr %s514, 4
      %s516 = scalar_lea.vmem %s3, %s515
      %p517 = scmp.lt.s32.totalorder %s16, 1
      %s518 = scalar_select %p517, %s16, 1
      %s519 = smul.addr %s518, 4
      %s520 = scalar_lea.vmem %s4, %s519
      // Predicated region
      $region33: #{basic_block_forward.3} parent=31 // pred_check
        %p521 = pneg %p102
      $region34: #{basic_block_forward.3} parent=31 // pred_check_branch
        %523 = sbr.rel (%p521) target = $region36
      $region35: #{basic_block_forward.3} parent=31 // pred_region
        _
      $region36: #{basic_block_forward.3} parent=31 // pred_fallthru
        _
      // Predicated region
      $region37: #{basic_block_forward.3} parent=31 // pred_check
        %p524 = pneg %p128
      $region38: #{basic_block_forward.3} parent=31 // pred_check_branch
        %526 = sbr.rel (%p524) target = $region40
      $region39: #{basic_block_forward.3} parent=31 // pred_region
        _
      $region40: #{basic_block_forward.3} parent=31 // pred_fallthru
        _
    $region32: #{basic_block_forward.3} parent=5 // pred_fallthru
      _
    %p527 = scmp.le.s32.totalorder 2, %s11
    // Predicated region
    $region41: #{basic_block_forward.3} parent=5 // pred_check
      %p528 = pneg %p527
    $region42: #{basic_block_forward.3} parent=5 // pred_check_branch
      %530 = sbr.rel (%p528) target = $region44
    $region43: #{basic_block_forward.3} parent=5 // pred_region
      %s531 = ssub.s32 %s11, 2
      // Predicated region
      $region45: #{basic_block_forward.3} parent=43 // pred_check
        %p532 = pneg %p108
      $region46: #{basic_block_forward.3} parent=43 // pred_check_branch
        %534 = sbr.rel (%p532) target = $region48
      $region47: #{basic_block_forward.3} parent=43 // pred_region
        %p535 = scmp.lt.s32.totalorder %s17, 1
        %s536 = scalar_select %p535, %s17, 1
        %s537 = smul.addr %s536, 2
        %s538 = smul.addr %s537, 4
        %s539 = scalar_lea.vmem %s3, %s538
      $region48: #{basic_block_forward.3} parent=43 // pred_fallthru
        _
      // Predicated region
      $region49: #{basic_block_forward.3} parent=43 // pred_check
        %p540 = pneg %p134
      $region50: #{basic_block_forward.3} parent=43 // pred_check_branch
        %542 = sbr.rel (%p540) target = $region52
      $region51: #{basic_block_forward.3} parent=43 // pred_region
        %p543 = scmp.lt.s32.totalorder %s17, 1
        %s544 = scalar_select %p543, %s17, 1
        %s545 = smul.addr %s544, 4
        %s546 = scalar_lea.vmem %s4, %s545
      $region52: #{basic_block_forward.3} parent=43 // pred_fallthru
        _
    $region44: #{basic_block_forward.3} parent=5 // pred_fallthru
      _
  $region6: #{basic_block_forward.3} parent=0 // loop_footer
    %s15 = sadd.s32 1, %s11
  $region7: #{basic_block_forward.3} parent=0 // loop_footer_branch
    %10 = sbr.rel target = $region3
  $region8: #{basic_block_forward.3} parent=0 // loop_exit
    _

// kernel: basic_block_forward.4
$region0: #{basic_block_forward.4}
  #allocation0 [shape = 'u32[]', space=smem, size = 0x4, offset = 0x4, fixed_abs, tag = 'smem constant byte address 0x4 - core index']
  #allocation1 [shape = 'u32[144,128]{1,0:T(1,128)}', space=vmem, size = 0x12000, scoped, tag = 'internal scratch']
  %s0 = inlined_call_operand.vmem [shape: f32[2,4,256], index: 0, kind: input, shape index: {}]
  %s1 = inlined_call_operand.vmem [shape: f32[4,1], index: 1, kind: input, shape index: {}]
  %s2 = inlined_call_operand.vmem [shape: f32[4,1], index: 2, kind: input, shape index: {}]
  %s3 = inlined_call_operand.vmem [shape: bf16[4,36], index: 3, kind: input, shape index: {}]
  %s4 = inlined_call_operand.vmem [shape: f32[9,256], index: 4, kind: input, shape index: {}]
  %s5 = inlined_call_operand.vmem [shape: f32[2,4,256], index: 5, kind: output, shape index: {0}]
  %s6 = inlined_call_operand.vmem [shape: f32[2,4,2], index: 6, kind: output, shape index: {1}]
  %7 = xla_tuple %s5, %s6
  %s8 = sld [smem:[#allocation0]]
  $region61: #{basic_block_forward.4} parent=0
    _
  %s10 = ssub.s32 1, %s8
  %s11 = scalar_select 0, %s10, %s8
  loop: start=0, step=1, limit=4
  $region2: #{basic_block_forward.4} parent=0 // loop_pre_header
    _
  $region3: #{basic_block_forward.4} parent=0 // loop_header
    %s13 = sphi 0, %s17
    %p14 = scmp.ge.s32.totalorder %s13, 4
    %s23 = sphi 0, %s25
    %s26 = sphi 0, %s23
    %s27 = sphi 0, %s26
    %s43 = sphi 0, %s27
    %s47 = sphi 0, %s47
    %s49 = sphi 0, %s47
    %s50 = sphi 0, %s49
    %s64 = sphi 0, %s50
    %s68 = sphi 0, %s68
    %s70 = sphi 0, %s68
    %s71 = sphi 0, %s70
    %s85 = sphi 0, %s71
    %s89 = sphi 0, %s89
    %s91 = sphi 0, %s89
    %s92 = sphi 0, %s91
    %s106 = sphi 0, %s92
    %s110 = sphi 0, %s110
    %s112 = sphi 0, %s110
    %s113 = sphi 0, %s112
    %s127 = sphi 0, %s113
    %s133 = sphi 0, %s135
    %s136 = sphi 0, %s133
    %s137 = sphi 0, %s136
    %s153 = sphi 0, %s137
    %s159 = sphi 0, %s161
    %s162 = sphi 0, %s159
    %s163 = sphi 0, %s162
    %s179 = sphi 0, %s163
  $region4: #{basic_block_forward.4} parent=0 // loop_header_branch
    %16 = sbr.rel (%p14) target = $region8
  $region5: #{basic_block_forward.4} parent=0 // loop_body
    %s18 = ssub.s32 %s13, 1
    %s19 = ssub.s32 %s13, 2
    %s20 = sadd.s32 %s13, 1
    %s21 = ssub.s32 %s13, %s20
    %p22 = scmp.eq.s32.totalorder %s21, 0
    %s24 = sadd.s32 %s23, 1
    %s25 = scalar_select %p22, %s23, %s24
    %p28 = pneg %p22
    %p29 = scmp.eq.s32.totalorder %s13, 1
    %p30 = por %p28, %p29
    %p31 = scmp.ne.s32.totalorder %s23, %s26
    %p32 = scmp.eq.s32.totalorder %s13, 0
    %p33 = por %p31, %p32
    %p34 = scmp.ne.s32.totalorder %s23, %s26
    %p35 = scmp.eq.s32.totalorder %s18, 1
    %p36 = por %p34, %p35
    %p37 = scmp.ne.s32.totalorder %s26, %s27
    %p38 = scmp.eq.s32.totalorder %s18, 0
    %p39 = por %p37, %p38
    %p40 = scmp.ne.s32.totalorder %s26, %s27
    %p41 = scmp.eq.s32.totalorder %s19, 1
    %p42 = por %p40, %p41
    %p44 = scmp.ne.s32.totalorder %s27, %s43
    %p45 = scmp.eq.s32.totalorder %s19, 0
    %p46 = por %p44, %p45
    %s48 = sadd.s32 %s47, 1
    %p51 = scmp.eq.s32.totalorder %s13, 1
    %p52 = scmp.ne.s32.totalorder %s47, %s49
    %p53 = scmp.eq.s32.totalorder %s13, 0
    %p54 = por %p52, %p53
    %p55 = scmp.ne.s32.totalorder %s47, %s49
    %p56 = scmp.eq.s32.totalorder %s18, 1
    %p57 = por %p55, %p56
    %p58 = scmp.ne.s32.totalorder %s49, %s50
    %p59 = scmp.eq.s32.totalorder %s18, 0
    %p60 = por %p58, %p59
    %p61 = scmp.ne.s32.totalorder %s49, %s50
    %p62 = scmp.eq.s32.totalorder %s19, 1
    %p63 = por %p61, %p62
    %p65 = scmp.ne.s32.totalorder %s50, %s64
    %p66 = scmp.eq.s32.totalorder %s19, 0
    %p67 = por %p65, %p66
    %s69 = sadd.s32 %s68, 1
    %p72 = scmp.eq.s32.totalorder %s13, 1
    %p73 = scmp.ne.s32.totalorder %s68, %s70
    %p74 = scmp.eq.s32.totalorder %s13, 0
    %p75 = por %p73, %p74
    %p76 = scmp.ne.s32.totalorder %s68, %s70
    %p77 = scmp.eq.s32.totalorder %s18, 1
    %p78 = por %p76, %p77
    %p79 = scmp.ne.s32.totalorder %s70, %s71
    %p80 = scmp.eq.s32.totalorder %s18, 0
    %p81 = por %p79, %p80
    %p82 = scmp.ne.s32.totalorder %s70, %s71
    %p83 = scmp.eq.s32.totalorder %s19, 1
    %p84 = por %p82, %p83
    %p86 = scmp.ne.s32.totalorder %s71, %s85
    %p87 = scmp.eq.s32.totalorder %s19, 0
    %p88 = por %p86, %p87
    %s90 = sadd.s32 %s89, 1
    %p93 = scmp.eq.s32.totalorder %s13, 1
    %p94 = scmp.ne.s32.totalorder %s89, %s91
    %p95 = scmp.eq.s32.totalorder %s13, 0
    %p96 = por %p94, %p95
    %p97 = scmp.ne.s32.totalorder %s89, %s91
    %p98 = scmp.eq.s32.totalorder %s18, 1
    %p99 = por %p97, %p98
    %p100 = scmp.ne.s32.totalorder %s91, %s92
    %p101 = scmp.eq.s32.totalorder %s18, 0
    %p102 = por %p100, %p101
    %p103 = scmp.ne.s32.totalorder %s91, %s92
    %p104 = scmp.eq.s32.totalorder %s19, 1
    %p105 = por %p103, %p104
    %p107 = scmp.ne.s32.totalorder %s92, %s106
    %p108 = scmp.eq.s32.totalorder %s19, 0
    %p109 = por %p107, %p108
    %s111 = sadd.s32 %s110, 1
    %p114 = scmp.eq.s32.totalorder %s13, 1
    %p115 = scmp.ne.s32.totalorder %s110, %s112
    %p116 = scmp.eq.s32.totalorder %s13, 0
    %p117 = por %p115, %p116
    %p118 = scmp.ne.s32.totalorder %s110, %s112
    %p119 = scmp.eq.s32.totalorder %s18, 1
    %p120 = por %p118, %p119
    %p121 = scmp.ne.s32.totalorder %s112, %s113
    %p122 = scmp.eq.s32.totalorder %s18, 0
    %p123 = por %p121, %p122
    %p124 = scmp.ne.s32.totalorder %s112, %s113
    %p125 = scmp.eq.s32.totalorder %s19, 1
    %p126 = por %p124, %p125
    %p128 = scmp.ne.s32.totalorder %s113, %s127
    %p129 = scmp.eq.s32.totalorder %s19, 0
    %p130 = por %p128, %p129
    %s131 = ssub.s32 %s13, %s20
    %p132 = scmp.eq.s32.totalorder %s131, 0
    %s134 = sadd.s32 %s133, 1
    %s135 = scalar_select %p132, %s133, %s134
    %p138 = pneg %p132
    %p139 = scmp.eq.s32.totalorder %s13, 1
    %p140 = por %p138, %p139
    %p141 = scmp.ne.s32.totalorder %s133, %s136
    %p142 = scmp.eq.s32.totalorder %s13, 0
    %p143 = por %p141, %p142
    %p144 = scmp.ne.s32.totalorder %s133, %s136
    %p145 = scmp.eq.s32.totalorder %s18, 1
    %p146 = por %p144, %p145
    %p147 = scmp.ne.s32.totalorder %s136, %s137
    %p148 = scmp.eq.s32.totalorder %s18, 0
    %p149 = por %p147, %p148
    %p150 = scmp.ne.s32.totalorder %s136, %s137
    %p151 = scmp.eq.s32.totalorder %s19, 1
    %p152 = por %p150, %p151
    %p154 = scmp.ne.s32.totalorder %s137, %s153
    %p155 = scmp.eq.s32.totalorder %s19, 0
    %p156 = por %p154, %p155
    %s157 = ssub.s32 %s13, %s20
    %p158 = scmp.eq.s32.totalorder %s157, 0
    %s160 = sadd.s32 %s159, 1
    %s161 = scalar_select %p158, %s159, %s160
    %p164 = pneg %p158
    %p165 = scmp.eq.s32.totalorder %s13, 1
    %p166 = por %p164, %p165
    %p167 = scmp.ne.s32.totalorder %s159, %s162
    %p168 = scmp.eq.s32.totalorder %s13, 0
    %p169 = por %p167, %p168
    %p170 = scmp.ne.s32.totalorder %s159, %s162
    %p171 = scmp.eq.s32.totalorder %s18, 1
    %p172 = por %p170, %p171
    %p173 = scmp.ne.s32.totalorder %s162, %s163
    %p174 = scmp.eq.s32.totalorder %s18, 0
    %p175 = por %p173, %p174
    %p176 = scmp.ne.s32.totalorder %s162, %s163
    %p177 = scmp.eq.s32.totalorder %s19, 1
    %p178 = por %p176, %p177
    %p180 = scmp.ne.s32.totalorder %s163, %s179
    %p181 = scmp.eq.s32.totalorder %s19, 0
    %p182 = por %p180, %p181
    %p183 = scmp.le.s32.totalorder 1, %s13
    %p184 = scmp.lt.s32.totalorder %s13, 3
    %p185 = pnand %p183, %p184
    %p186 = pneg %p185
    // Predicated region
    $region9: #{basic_block_forward.4} parent=5 // pred_check
      _
    $region10: #{basic_block_forward.4} parent=5 // pred_check_branch
      %188 = sbr.rel (%p185) target = $region12
    $region11: #{basic_block_forward.4} parent=5 // pred_region
      %s189 = ssub.s32 %s13, 1
      // Predicated region
      $region13: #{basic_block_forward.4} parent=11 // pred_check
        %p190 = pneg %p60
      $region14: #{basic_block_forward.4} parent=11 // pred_check_branch
        %192 = sbr.rel (%p190) target = $region16
      $region15: #{basic_block_forward.4} parent=11 // pred_region
        _
      $region16: #{basic_block_forward.4} parent=11 // pred_fallthru
        _
      // Predicated region
      $region17: #{basic_block_forward.4} parent=11 // pred_check
        %p193 = pneg %p81
      $region18: #{basic_block_forward.4} parent=11 // pred_check_branch
        %195 = sbr.rel (%p193) target = $region20
      $region19: #{basic_block_forward.4} parent=11 // pred_region
        _
      $region20: #{basic_block_forward.4} parent=11 // pred_fallthru
        _
      // Predicated region
      $region21: #{basic_block_forward.4} parent=11 // pred_check
        %p196 = pneg %p102
      $region22: #{basic_block_forward.4} parent=11 // pred_check_branch
        %198 = sbr.rel (%p196) target = $region24
      $region23: #{basic_block_forward.4} parent=11 // pred_region
        _
      $region24: #{basic_block_forward.4} parent=11 // pred_fallthru
        _
      // Predicated region
      $region25: #{basic_block_forward.4} parent=11 // pred_check
        %p199 = pneg %p123
      $region26: #{basic_block_forward.4} parent=11 // pred_check_branch
        %201 = sbr.rel (%p199) target = $region28
      $region27: #{basic_block_forward.4} parent=11 // pred_region
        _
      $region28: #{basic_block_forward.4} parent=11 // pred_fallthru
        _
    $region12: #{basic_block_forward.4} parent=5 // pred_fallthru
      _
    %p202 = scmp.lt.s32.totalorder %s13, 2
    // Predicated region
    $region29: #{basic_block_forward.4} parent=5 // pred_check
      %p203 = pneg %p202
    $region30: #{basic_block_forward.4} parent=5 // pred_check_branch
      %205 = sbr.rel (%p203) target = $region32
    $region31: #{basic_block_forward.4} parent=5 // pred_region
      // Predicated region
      $region33: #{basic_block_forward.4} parent=31 // pred_check
        %p206 = pneg %p33
      $region34: #{basic_block_forward.4} parent=31 // pred_check_branch
        %208 = sbr.rel (%p206) target = $region36
      $region35: #{basic_block_forward.4} parent=31 // pred_region
        %p209 = scmp.lt.s32.totalorder %s13, 1
        %s210 = scalar_select %p209, %s13, 1
        %s211 = smul.addr %s210, 2
        %s212 = smul.addr %s211, 4
        %s213 = scalar_lea.vmem %s0, %s212
      $region36: #{basic_block_forward.4} parent=31 // pred_fallthru
        _
    $region32: #{basic_block_forward.4} parent=5 // pred_fallthru
      _
    %p214 = scmp.le.s32.totalorder 1, %s13
    %p215 = scmp.lt.s32.totalorder %s13, 3
    %p216 = pnand %p214, %p215
    %p217 = pneg %p216
    // Predicated region
    $region37: #{basic_block_forward.4} parent=5 // pred_check
      _
    $region38: #{basic_block_forward.4} parent=5 // pred_check_branch
      %219 = sbr.rel (%p216) target = $region40
    $region39: #{basic_block_forward.4} parent=5 // pred_region
      %s220 = ssub.s32 %s13, 1
      %p221 = scmp.lt.s32.totalorder %s18, 1
      %s222 = scalar_select %p221, %s18, 1
      %s223 = smul.addr %s222, 2
      %s224 = smul.addr %s223, 4
      %s225 = scalar_lea.vmem %s0, %s224
      %p226 = pneg %p39
      %p227 = pneg %p36
      %p228 = pneg %p60
      %p229 = pneg %p57
      %p230 = pneg %p81
      %p231 = pneg %p78
      %p232 = pneg %p102
      %p233 = pneg %p99
      %p234 = pneg %p123
      %p235 = pneg %p120
      %p236 = pneg %p149
      %p237 = pneg %p146
      %p238 = scmp.lt.s32.totalorder %s18, 1
      %s239 = scalar_select %p238, %s18, 1
      %s240 = smul.addr %s239, 2
      %s241 = smul.addr %s240, 4
      %s242 = scalar_lea.vmem %s5, %s241
      %p243 = pneg %p175
      %p244 = pneg %p172
      %p245 = scmp.lt.s32.totalorder %s18, 1
      %s246 = scalar_select %p245, %s18, 1
      %s247 = smul.addr %s246, 4
      %s248 = scalar_lea.vmem %s6, %s247
      %p249 = scmp.lt.s32.totalorder %s18, 1
      %s250 = scalar_select %p249, %s18, 1
      %s251 = smul.addr %s250, 2
      %s252 = smul.addr %s251, 4
      %s253 = scalar_lea.vmem %s0, %s252
      %p254 = scmp.lt.s32.totalorder %s18, 1
      %s255 = scalar_select %p254, %s18, 1
      %s256 = smul.addr %s255, 2
      %s257 = smul.addr %s256, 4
      %s258 = scalar_lea.vmem %s5, %s257
      %p259 = scmp.lt.s32.totalorder %s18, 1
      %s260 = scalar_select %p259, %s18, 1
      %s261 = smul.addr %s260, 4
      %s262 = scalar_lea.vmem %s6, %s261
      %v264 = vld [vmem:[%s253] sm:$0xff]
      %v265 = vld [vmem:[%s1] sm:$0xf]
      %267 = vset.pattern.permute.xlu0 0
      %268 = vperm.xlu0 %267, %v265
      %v269 = vpop.permute.xlu0 %268
      %v271 = vunpack.c.l.s4 839922192
      %v272 = vunpack.c.0.s8 %v271
      %v273 = vlaneseq
      %v274 = vshrl.u32 %v273, 7
      %v275 = vsub.s32 %v272, %v274
      %v276 = vrot.slane %v269, %v275
      %v278 = vmul.f32 %v264, %v276
      %v279 = vld [vmem:[%s2] sm:$0xf]
      %281 = vset.pattern.permute.xlu0 0
      %282 = vperm.xlu0 %281, %v279
      %v283 = vpop.permute.xlu0 %282
      %v285 = vunpack.c.l.s4 839922192
      %v286 = vunpack.c.0.s8 %v285
      %v287 = vlaneseq
      %v288 = vshrl.u32 %v287, 7
      %v289 = vsub.s32 %v286, %v288
      %v290 = vrot.slane %v283, %v289
      %v292 = vadd.f32 %v278, %v290
      %v293 = vmax.f32 %v292, 0.0
      %v295 = vcombine.high %v293, %v293
      %297 = vrot.lane.b32.xlu0 %v293, 17
      %v298 = vpop.permute.xlu0 %297
      %299 = vrot.lane.b32.xlu0 %v295, 17
      %v300 = vpop.permute.xlu0 %299
      %v301 = vlaneseq
      %v302 = vand.u32 %v301, 127
      %vm303 = vcmp.lt.s32.totalorder %v302, 17
      %v304 = vsel %vm303, %v298, %v300
      %v305 = vsel %vm303, %v300, %v298
      %v306 = vld [vmem:[%s4] ss:$8 sm:$0x3]
      %vm307 = vcmp.ne.f32.partialorder %v306, 0.0
      %v308 = vsel %vm307, 1, 0
      %v309 = vlaneseq
      %v310 = vshrl.u32 %v309, 7
      %v311 = vsub.s32 0, %v310
      %v312 = vrot.slane %v308, %v311
      %v313 = vlaneseq
      %v314 = vshrl.u32 %v313, 7
      %v315 = vsub.s32 1, %v314
      %v316 = vrot.slane %v308, %v315
      %vm317 = vcmp.eq.s32.totalorder %v312, 1
      %vm318 = vcmp.eq.s32.totalorder %v316, 1
      %v319 = vsel %vm317, %v305, 0.0
      %v320 = vsel %vm318, %v304, 0.0
      %321 = vrot.lane.b32.xlu0 %v293, 16
      %v322 = vpop.permute.xlu0 %321
      %323 = vrot.lane.b32.xlu0 %v295, 16
      %v324 = vpop.permute.xlu0 %323
      %vm325 = vcmp.lt.s32.totalorder %v302, 16
      %v326 = vsel %vm325, %v322, %v324
      %v327 = vsel %vm325, %v324, %v322
      %s328 = scalar_lea.vmem %s4, 1
      %v329 = vld [vmem:[%s328] ss:$8 sm:$0x3]
      %vm330 = vcmp.ne.f32.partialorder %v329, 0.0
      %v331 = vsel %vm330, 1, 0
      %v332 = vlaneseq
      %v333 = vshrl.u32 %v332, 7
      %v334 = vsub.s32 0, %v333
      %v335 = vrot.slane %v331, %v334
      %v336 = vlaneseq
      %v337 = vshrl.u32 %v336, 7
      %v338 = vsub.s32 1, %v337
      %v339 = vrot.slane %v331, %v338
      %vm340 = vcmp.eq.s32.totalorder %v335, 1
      %vm341 = vcmp.eq.s32.totalorder %v339, 1
      %v342 = vsel %vm340, %v327, 0.0
      %v343 = vsel %vm341, %v326, 0.0
      %344 = vrot.lane.b32.xlu0 %v293, 15
      %v345 = vpop.permute.xlu0 %344
      %346 = vrot.lane.b32.xlu0 %v295, 15
      %v347 = vpop.permute.xlu0 %346
      %vm348 = vcmp.lt.s32.totalorder %v302, 15
      %v349 = vsel %vm348, %v345, %v347
      %v350 = vsel %vm348, %v347, %v345
      %s351 = scalar_lea.vmem %s4, 2
      %v352 = vld [vmem:[%s351] ss:$8 sm:$0x3]
      %vm353 = vcmp.ne.f32.partialorder %v352, 0.0
      %v354 = vsel %vm353, 1, 0
      %v355 = vlaneseq
      %v356 = vshrl.u32 %v355, 7
      %v357 = vsub.s32 0, %v356
      %v358 = vrot.slane %v354, %v357
      %v359 = vlaneseq
      %v360 = vshrl.u32 %v359, 7
      %v361 = vsub.s32 1, %v360
      %v362 = vrot.slane %v354, %v361
      %vm363 = vcmp.eq.s32.totalorder %v358, 1
      %vm364 = vcmp.eq.s32.totalorder %v362, 1
      %v365 = vsel %vm363, %v350, 0.0
      %v366 = vsel %vm364, %v349, 0.0
      %367 = vrot.lane.b32.xlu0 %v293, 1
      %v368 = vpop.permute.xlu0 %367
      %369 = vrot.lane.b32.xlu0 %v295, 1
      %v370 = vpop.permute.xlu0 %369
      %vm371 = vcmp.lt.s32.totalorder %v302, 1
      %v372 = vsel %vm371, %v368, %v370
      %v373 = vsel %vm371, %v370, %v368
      %s374 = scalar_lea.vmem %s4, 3
      %v375 = vld [vmem:[%s374] ss:$8 sm:$0x3]
      %vm376 = vcmp.ne.f32.partialorder %v375, 0.0
      %v377 = vsel %vm376, 1, 0
      %v378 = vlaneseq
      %v379 = vshrl.u32 %v378, 7
      %v380 = vsub.s32 0, %v379
      %v381 = vrot.slane %v377, %v380
      %v382 = vlaneseq
      %v383 = vshrl.u32 %v382, 7
      %v384 = vsub.s32 1, %v383
      %v385 = vrot.slane %v377, %v384
      %vm386 = vcmp.eq.s32.totalorder %v381, 1
      %vm387 = vcmp.eq.s32.totalorder %v385, 1
      %v388 = vsel %vm386, %v373, 0.0
      %v389 = vsel %vm387, %v372, 0.0
      %390 = vrot.lane.b32.xlu0 %v293, 127
      %v391 = vpop.permute.xlu0 %390
      %392 = vrot.lane.b32.xlu0 %v295, 127
      %v393 = vpop.permute.xlu0 %392
      %vm394 = vcmp.lt.s32.totalorder %v302, 127
      %v395 = vsel %vm394, %v391, %v393
      %v396 = vsel %vm394, %v393, %v391
      %s397 = scalar_lea.vmem %s4, 5
      %v398 = vld [vmem:[%s397] ss:$8 sm:$0x3]
      %vm399 = vcmp.ne.f32.partialorder %v398, 0.0
      %v400 = vsel %vm399, 1, 0
      %v401 = vlaneseq
      %v402 = vshrl.u32 %v401, 7
      %v403 = vsub.s32 0, %v402
      %v404 = vrot.slane %v400, %v403
      %v405 = vlaneseq
      %v406 = vshrl.u32 %v405, 7
      %v407 = vsub.s32 1, %v406
      %v408 = vrot.slane %v400, %v407
      %vm409 = vcmp.eq.s32.totalorder %v404, 1
      %vm410 = vcmp.eq.s32.totalorder %v408, 1
      %v411 = vsel %vm409, %v395, 0.0
      %v412 = vsel %vm410, %v396, 0.0
      %413 = vrot.lane.b32.xlu0 %v293, 113
      %v414 = vpop.permute.xlu0 %413
      %415 = vrot.lane.b32.xlu0 %v295, 113
      %v416 = vpop.permute.xlu0 %415
      %vm417 = vcmp.lt.s32.totalorder %v302, 113
      %v418 = vsel %vm417, %v414, %v416
      %v419 = vsel %vm417, %v416, %v414
      %s420 = scalar_lea.vmem %s4, 6
      %v421 = vld [vmem:[%s420] ss:$8 sm:$0x3]
      %vm422 = vcmp.ne.f32.partialorder %v421, 0.0
      %v423 = vsel %vm422, 1, 0
      %v424 = vlaneseq
      %v425 = vshrl.u32 %v424, 7
      %v426 = vsub.s32 0, %v425
      %v427 = vrot.slane %v423, %v426
      %v428 = vlaneseq
      %v429 = vshrl.u32 %v428, 7
      %v430 = vsub.s32 1, %v429
      %v431 = vrot.slane %v423, %v430
      %vm432 = vcmp.eq.s32.totalorder %v427, 1
      %vm433 = vcmp.eq.s32.totalorder %v431, 1
      %v434 = vsel %vm432, %v418, 0.0
      %v435 = vsel %vm433, %v419, 0.0
      %436 = vrot.lane.b32.xlu0 %v293, 112
      %v437 = vpop.permute.xlu0 %436
      %438 = vrot.lane.b32.xlu0 %v295, 112
      %v439 = vpop.permute.xlu0 %438
      %vm440 = vcmp.lt.s32.totalorder %v302, 112
      %v441 = vsel %vm440, %v437, %v439
      %v442 = vsel %vm440, %v439, %v437
      %s443 = scalar_lea.vmem %s4, 7
      %v444 = vld [vmem:[%s443] ss:$8 sm:$0x3]
      %vm445 = vcmp.ne.f32.partialorder %v444, 0.0
      %v446 = vsel %vm445, 1, 0
      %v447 = vlaneseq
      %v448 = vshrl.u32 %v447, 7
      %v449 = vsub.s32 0, %v448
      %v450 = vrot.slane %v446, %v449
      %v451 = vlaneseq
      %v452 = vshrl.u32 %v451, 7
      %v453 = vsub.s32 1, %v452
      %v454 = vrot.slane %v446, %v453
      %vm455 = vcmp.eq.s32.totalorder %v450, 1
      %vm456 = vcmp.eq.s32.totalorder %v454, 1
      %v457 = vsel %vm455, %v441, 0.0
      %v458 = vsel %vm456, %v442, 0.0
      %459 = vrot.lane.b32.xlu0 %v293, 111
      %v460 = vpop.permute.xlu0 %459
      %461 = vrot.lane.b32.xlu0 %v295, 111
      %v462 = vpop.permute.xlu0 %461
      %vm463 = vcmp.lt.s32.totalorder %v302, 111
      %v464 = vsel %vm463, %v460, %v462
      %v465 = vsel %vm463, %v462, %v460
      %s466 = scalar_lea.vmem %s4, 16
      %v467 = vld [vmem:[%s466] ss:$8 sm:$0x3]
      %vm468 = vcmp.ne.f32.partialorder %v467, 0.0
      %v469 = vsel %vm468, 1, 0
      %v470 = vlaneseq
      %v471 = vshrl.u32 %v470, 7
      %v472 = vsub.s32 0, %v471
      %v473 = vrot.slane %v469, %v472
      %v474 = vlaneseq
      %v475 = vshrl.u32 %v474, 7
      %v476 = vsub.s32 1, %v475
      %v477 = vrot.slane %v469, %v476
      %vm478 = vcmp.eq.s32.totalorder %v473, 1
      %vm479 = vcmp.eq.s32.totalorder %v477, 1
      %v480 = vsel %vm478, %v464, 0.0
      %v481 = vsel %vm479, %v465, 0.0
      %v484 = vrot.slane %v342, 4
      %v485 = vrot.slane %v343, 4
      %v490 = vrot.slane %v388, 4
      %v491 = vrot.slane %v389, 4
      %v496 = vrot.slane %v411, 4
      %v497 = vrot.slane %v412, 4
      %v502 = vrot.slane %v457, 4
      %v503 = vrot.slane %v458, 4
      %vm506 = vcmask 1043456
      %v507 = vsel %vm506, %v319, %v484
      %v508 = vsel %vm506, %v320, %v485
      %v509 = vsel %vm506, %v365, %v490
      %v510 = vsel %vm506, %v366, %v491
      %v511 = vsel %vm506, %v293, %v496
      %v512 = vsel %vm506, %v295, %v497
      %v513 = vsel %vm506, %v434, %v502
      %v514 = vsel %vm506, %v435, %v503
      %v515 = vpack.c.bf16 %v509, %v507
      %v516 = vpack.c.bf16 %v510, %v508
      %v517 = vpack.c.bf16 %v513, %v511
      %v518 = vpack.c.bf16 %v514, %v512
      %v519 = vpack.c.bf16 %v480, %v480
      %v520 = vpack.c.bf16 %v481, %v481
      %v521 = vld [vmem:[%s3] sm:$0x3]
      %vm522 = vcmask 293888
      %v524 = vsel %vm522, %v521, 0
      %vm526 = vcmask 1041408
      %v528 = vsel %vm526, %v519, 0
      %v531 = vsel %vm526, %v520, 0
      %533 = vmatprep.subr.bf16.mxu0 %v516
      %534 = vmatpush1.bf16.msra.mxu0 %v515
      %535 = vmatprep.subr.bf16.mxu0 %v518
      %536 = vmatpush1.bf16.msra.mxu0 %v517
      %537 = vmatprep.subr.bf16.mxu0 %v531
      %538 = vmatpush1.bf16.msra.mxu0 %v528
      %539 = vmatprep.subr.bf16.mxu0 0
      %540 = vmatpush1.bf16.msra.mxu0 0
      %541 = vmatprep.subr.bf16.mxu0 0
      %542 = vmatpush1.bf16.msra.mxu0 0
      %543 = vmatprep.subr.bf16.mxu0 0
      %544 = vmatpush1.bf16.msra.mxu0 0
      %545 = vmatprep.subr.bf16.mxu0 0
      %546 = vmatpush1.bf16.msra.mxu0 0
      %547 = vmatprep.subr.bf16.mxu0 0
      %548 = vmatpush1.bf16.msra.mxu0 0
      %549 = vmatprep.subr.bf16.mxu0 0
      %550 = vmatpush1.bf16.msra.mxu0 0
      %551 = vmatprep.subr.bf16.mxu0 0
      %552 = vmatpush1.bf16.msra.mxu0 0
      %553 = vmatprep.subr.bf16.mxu0 0
      %554 = vmatpush1.bf16.msra.mxu0 0
      %555 = vmatprep.subr.bf16.mxu0 0
      %556 = vmatpush1.bf16.msra.mxu0 0
      %557 = vmatprep.subr.bf16.mxu0 0
      %558 = vmatpush1.bf16.msra.mxu0 0
      %559 = vmatprep.subr.bf16.mxu0 0
      %560 = vmatpush1.bf16.msra.mxu0 0
      %561 = vmatprep.subr.bf16.mxu0 0
      %562 = vmatpush1.bf16.msra.mxu0 0
      %563 = vmatprep.subr.bf16.mxu0 0
      %564 = vmatpush1.bf16.msra.mxu0 0
      %565 = vmatprep.mubr.bf16.mxu0 0
      %566 = vmatmul.mubr.bf16.gmra.mrb[0].mxu0 %v524
      %v567 = vpop.f32.mrb[0].mxu0
      %v568 = vadd.f32 0.0, %v567
      %v569 = vpop.f32.mrb[0].mxu0
      %v570 = vadd.f32 0.0, %v569
      %v571 = vpop.f32.mrb[0].mxu0
      %v572 = vpop.f32.mrb[0].mxu0
      %573 = vdwg.mxu0
      %v576 = vcombine.low %v568, %v570
      %578 = vst [vmem:[%s258] sm:$0xff] %v576
      %v579 = vsel %vm506, %v568, 0.0
      %v580 = vsel %vm506, %v570, 0.0
      %v581 = vadd.f32 %v579, %v580
      %582 = vadd.xlane.f32.xlu0 %v581
      %v583 = vpop.xlane.xlu0 %582
      %v584 = vmul.f32 %v568, %v568
      %v585 = vmul.f32 %v570, %v570
      %v586 = vsel %vm506, %v584, 0.0
      %v587 = vsel %vm506, %v585, 0.0
      %v588 = vadd.f32 %v586, %v587
      %589 = vadd.xlane.f32.xlu0 %v588
      %v590 = vpop.xlane.xlu0 %589
      %vm591 = vcmask 7168
      %v592 = vsel %vm591, %v583, %v590
      %vm593 = vcmask 11264
      %594 = vst.msk [vmem:[%s262] sm:$0xf] %vm593, %v592
      %p595 = scmp.lt.s32.totalorder %s18, 1
      %s596 = scalar_select %p595, %s18, 1
      %s597 = smul.addr %s596, 2
      %s598 = smul.addr %s597, 4
      %s599 = scalar_lea.vmem %s5, %s598
      %p600 = scmp.lt.s32.totalorder %s18, 1
      %s601 = scalar_select %p600, %s18, 1
      %s602 = smul.addr %s601, 4
      %s603 = scalar_lea.vmem %s6, %s602
      // Predicated region
      $region41: #{basic_block_forward.4} parent=39 // pred_check
        %p604 = pneg %p146
      $region42: #{basic_block_forward.4} parent=39 // pred_check_branch
        %606 = sbr.rel (%p604) target = $region44
      $region43: #{basic_block_forward.4} parent=39 // pred_region
        _
      $region44: #{basic_block_forward.4} parent=39 // pred_fallthru
        _
      // Predicated region
      $region45: #{basic_block_forward.4} parent=39 // pred_check
        %p607 = pneg %p172
      $region46: #{basic_block_forward.4} parent=39 // pred_check_branch
        %609 = sbr.rel (%p607) target = $region48
      $region47: #{basic_block_forward.4} parent=39 // pred_region
        _
      $region48: #{basic_block_forward.4} parent=39 // pred_fallthru
        _
    $region40: #{basic_block_forward.4} parent=5 // pred_fallthru
      _
    %p610 = scmp.le.s32.totalorder 2, %s13
    // Predicated region
    $region49: #{basic_block_forward.4} parent=5 // pred_check
      %p611 = pneg %p610
    $region50: #{basic_block_forward.4} parent=5 // pred_check_branch
      %613 = sbr.rel (%p611) target = $region52
    $region51: #{basic_block_forward.4} parent=5 // pred_region
      %s614 = ssub.s32 %s13, 2
      // Predicated region
      $region53: #{basic_block_forward.4} parent=51 // pred_check
        %p615 = pneg %p152
      $region54: #{basic_block_forward.4} parent=51 // pred_check_branch
        %617 = sbr.rel (%p615) target = $region56
      $region55: #{basic_block_forward.4} parent=51 // pred_region
        %p618 = scmp.lt.s32.totalorder %s19, 1
        %s619 = scalar_select %p618, %s19, 1
        %s620 = smul.addr %s619, 2
        %s621 = smul.addr %s620, 4
        %s622 = scalar_lea.vmem %s5, %s621
      $region56: #{basic_block_forward.4} parent=51 // pred_fallthru
        _
      // Predicated region
      $region57: #{basic_block_forward.4} parent=51 // pred_check
        %p623 = pneg %p178
      $region58: #{basic_block_forward.4} parent=51 // pred_check_branch
        %625 = sbr.rel (%p623) target = $region60
      $region59: #{basic_block_forward.4} parent=51 // pred_region
        %p626 = scmp.lt.s32.totalorder %s19, 1
        %s627 = scalar_select %p626, %s19, 1
        %s628 = smul.addr %s627, 4
        %s629 = scalar_lea.vmem %s6, %s628
      $region60: #{basic_block_forward.4} parent=51 // pred_fallthru
        _
    $region52: #{basic_block_forward.4} parent=5 // pred_fallthru
      _
  $region6: #{basic_block_forward.4} parent=0 // loop_footer
    %s17 = sadd.s32 1, %s13
  $region7: #{basic_block_forward.4} parent=0 // loop_footer_branch
    %12 = sbr.rel target = $region3
  $region8: #{basic_block_forward.4} parent=0 // loop_exit
    _

</llo_original>
